<compile_context>
chip_gen: v6e
topology: v6e:2x2x1
jax: 0.10.0
libtpu: 0.0.40
codegen_flags: <defaults>
</compile_context>

<pallas_src>
import functools

import jax
import jax.numpy as jnp
import numpy as np
from jax.experimental import pallas as pl
from jax.experimental.pallas import tpu as pltpu

LEAKY_SLOPE = 0.2
BN_EPS = 1e-5


def _choose_tl(l_use, pool):
    """Pick an L tile that divides the used conv length and keeps pooled stores lane-dense."""
    for tl in (4096, 2048, 1024, 512):
        if tl <= l_use and l_use % tl == 0 and tl % (pool * 128) == 0:
            return tl
    return l_use  # single tile (small problems); block dims then equal the full array dims.


# ------------------ fused Conv1d + MaxPool1d + BN-partial-stats kernel (per (b, L-tile)) ------------------ #
def _conv_pool_stats_kernel(x_ref, w_ref, y_ref, ssum_ref, ssq_ref, conv_ref,
                            *, K, TL, TLH, TLP, pool):
    # x_ref:    (1, L_in + 2*pad, C_in)  bf16, channels-last, zero-padded; resident per sample.
    # w_ref:    (K*C_in, C_out)          bf16, taps packed along the contraction dim.
    # y_ref:    (1, C_out, TLP)          bf16 pooled pre-BN activation (PyTorch layout, lane-dense).
    # ssum_ref, ssq_ref: (1, 1, 1, C_out) per-(b, tile) channel sum / sum-of-squares partials (f32).
    # conv_ref: VMEM scratch (TL, C_out) f32 -- conv output of this tile never touches HBM.
    j = pl.program_id(1)
    start = pl.multiple_of(j * TL, TL)

    # Haloed window of this L-tile (channels on lanes -> MXU-friendly, no transpose needed).
    xw = x_ref[0, pl.ds(start, TLH), :]                                   # (TLH, C_in) bf16

    # Pack all K taps along lanes -> one deep MXU contraction instead of K shallow ones.
    xp = jnp.concatenate([xw[k:k + TL, :] for k in range(K)], axis=-1)    # (TL, K*C_in) bf16
    conv_ref[...] = jnp.dot(xp, w_ref[...], preferred_element_type=jnp.float32)
    # NOTE: conv bias intentionally omitted -- it cancels exactly under MaxPool + training-mode BN.

    # MaxPool1d(pool): elementwise max of `pool` sublane-strided views of the conv scratch.
    p = conv_ref[pl.ds(0, TLP, stride=pool), :]
    for q in range(1, pool):
        p = jnp.maximum(p, conv_ref[pl.ds(q, TLP, stride=pool), :])       # (TLP, C_out) f32

    # Partial BatchNorm statistics for this (sample, tile).
    ssum_ref[...] = jnp.sum(p, axis=0)[None, None, None, :]
    ssq_ref[...] = jnp.sum(p * p, axis=0)[None, None, None, :]

    # Emit in PyTorch (C_out, L_pool) layout -> lane-dense stores, no wrapper transpose.
    y_ref[0] = p.T.astype(y_ref.dtype)


# --------------------------------- BatchNorm (folded) + LeakyReLU kernel ---------------------------------- #
def _bn_leaky_kernel(y_ref, scale_ref, shift_ref, o_ref):
    # y_ref: (1, C_out, TLP) bf16; scale/shift: (C_out, 1) f32 broadcast along lanes; o_ref f32.
    z = y_ref[0].astype(jnp.float32) * scale_ref[...] + shift_ref[...]
    o_ref[0] = jnp.where(z >= 0, z, LEAKY_SLOPE * z)


# ----------------------------------------------- forward pass --------------------------------------------- #
def dcgan_conv1d_forward(x, params, *, pool=4, tl=None):
    """x: (B, C_in, L) float32 (PyTorch NCL). Returns (B, C_out, (L + 2*(K//2) - K + 1)//pool) f32."""
    w_packed = params["w_packed"]          # (K*C_in, C_out) bf16
    gamma = params["gamma"]                # (C_out,) f32
    beta = params["beta"]                  # (C_out,) f32

    B, C_in, L_in = x.shape
    KC, C_out = w_packed.shape
    assert KC % C_in == 0
    K = KC // C_in
    pad = K // 2
    L_conv = L_in + 2 * pad - (K - 1)
    L_pool = L_conv // pool                # PyTorch MaxPool1d floors; tail positions are dropped.
    assert L_pool >= 1
    L_use = L_pool * pool

    if tl is None:
        tl = _choose_tl(L_use, pool)
    if L_use % tl != 0 or tl % pool != 0:
        raise ValueError(f"tl={tl} must divide L_use={L_use} and be a multiple of pool={pool}")
    nL = L_use // tl
    TLP = tl // pool
    if nL > 1 and TLP % 128 != 0:
        raise ValueError(f"pooled tile width {TLP} must be a multiple of 128 when nL>1")
    TLH = tl + K - 1                       # haloed input window per L-tile

    # One-time XLA staging: channels-last, zero-padded, bf16 (halves HBM reads, removes the
    # in-kernel transpose/pad copies entirely).
    x_cl = jnp.pad(jnp.transpose(x, (0, 2, 1)).astype(jnp.bfloat16),
                   ((0, 0), (pad, pad), (0, 0)))                          # (B, L_in + 2*pad, C_in)
    L_padded = L_in + 2 * pad

    kernel = functools.partial(_conv_pool_stats_kernel, K=K, TL=tl, TLH=TLH, TLP=TLP, pool=pool)
    y, ssum, ssq = pl.pallas_call(
        kernel,
        out_shape=(
            jax.ShapeDtypeStruct((B, C_out, L_pool), jnp.bfloat16),       # pooled pre-BN (bf16)
            jax.ShapeDtypeStruct((B, nL, 1, C_out), jnp.float32),         # partial channel sums
            jax.ShapeDtypeStruct((B, nL, 1, C_out), jnp.float32),         # partial channel sum-sq
        ),
        grid=(B, nL),
        in_specs=[
            # Full padded sample stays resident across its L-tiles (index_map ignores j).
            pl.BlockSpec((1, L_padded, C_in), lambda b, j: (b, 0, 0)),
            pl.BlockSpec((KC, C_out), lambda b, j: (0, 0)),
        ],
        out_specs=(
            pl.BlockSpec((1, C_out, TLP), lambda b, j: (b, 0, j)),
            pl.BlockSpec((1, 1, 1, C_out), lambda b, j: (b, j, 0, 0)),
            pl.BlockSpec((1, 1, 1, C_out), lambda b, j: (b, j, 0, 0)),
        ),
        scratch_shapes=[pltpu.VMEM((tl, C_out), jnp.float32)],
        compiler_params=pltpu.CompilerParams(
            dimension_semantics=("parallel", "parallel"),
            vmem_limit_bytes=32 * 1024 * 1024,
        ),
    )(x_cl, w_packed)

    # Training-mode BatchNorm1d finalize: batch stats over (batch, length), biased var, eps=1e-5,
    # folded into per-channel scale/shift.
    n = B * L_pool
    mean = jnp.sum(ssum, axis=(0, 1, 2)) / n
    var = jnp.maximum(jnp.sum(ssq, axis=(0, 1, 2)) / n - mean * mean, 0.0)
    rstd = jax.lax.rsqrt(var + BN_EPS)
    scale = (gamma * rstd).astype(jnp.float32).reshape(C_out, 1)
    shift = (beta - mean * gamma * rstd).astype(jnp.float32).reshape(C_out, 1)

    out = pl.pallas_call(
        _bn_leaky_kernel,
        out_shape=jax.ShapeDtypeStruct((B, C_out, L_pool), jnp.float32),
        grid=(B, nL),
        in_specs=[
            pl.BlockSpec((1, C_out, TLP), lambda b, j: (b, 0, j)),
            pl.BlockSpec((C_out, 1), lambda b, j: (0, 0)),
            pl.BlockSpec((C_out, 1), lambda b, j: (0, 0)),
        ],
        out_specs=pl.BlockSpec((1, C_out, TLP), lambda b, j: (b, 0, j)),
        compiler_params=pltpu.CompilerParams(dimension_semantics=("parallel", "parallel")),
    )(y, scale, shift)
    return out


# ------------------------------ one-time parameter preprocessing (outside jit) ----------------------------- #
def prepare_params(w_torch, b, gamma, beta):
    """PyTorch Conv1d weight (C_out, C_in, K) -> lane-packed (K*C_in, C_out) bf16.

    The conv bias `b` is accepted for API parity but intentionally NOT used: a per-channel
    constant commutes with MaxPool and cancels exactly in training-mode BatchNorm, so the
    module's final output is unchanged without it (the internal BN mean partials shift by b).
    """
    del b
    C_out, C_in, K = w_torch.shape
    w_packed = jnp.transpose(w_torch, (2, 1, 0)).reshape(K * C_in, C_out).astype(jnp.bfloat16)
    return dict(
        w_packed=w_packed,
        gamma=jnp.asarray(gamma, jnp.float32),
        beta=jnp.asarray(beta, jnp.float32),
    )


# ------------------------------------------- pure-JAX reference -------------------------------------------- #
def reference_forward(x, w_torch, b, gamma, beta, *, pool=4):
    pad = w_torch.shape[-1] // 2
    y = jax.lax.conv_general_dilated(x, w_torch, window_strides=(1,), padding=[(pad, pad)],
                                     dimension_numbers=("NCH", "OIH", "NCH"))
    y = y + b[None, :, None]
    y = jax.lax.reduce_window(y, -jnp.inf, jax.lax.max,
                              window_dimensions=(1, 1, pool), window_strides=(1, 1, pool),
                              padding="VALID")
    mean = jnp.mean(y, axis=(0, 2), keepdims=True)
    var = jnp.mean(jnp.square(y - mean), axis=(0, 2), keepdims=True)
    z = (y - mean) / jnp.sqrt(var + BN_EPS) * gamma[None, :, None] + beta[None, :, None]
    return jnp.where(z >= 0, z, LEAKY_SLOPE * z)


if __name__ == "__main__":
    # Small shapes consistent with the module (nin=64 -> nout=64, kernel_size=5, pool_kernel=4).
    # L=2048 with tl=512 exercises the multi-L-tile path (nL=4, pooled tile width 128).
    B, C_IN, C_OUT, K, L, POOL = 4, 64, 64, 5, 2048, 4
    key = jax.random.PRNGKey(0)
    k1, k2, k3, k4, k5 = jax.random.split(key, 5)
    # PyTorch-layout parameters.
    w_torch = 0.05 * jax.random.normal(k1, (C_OUT, C_IN, K), jnp.float32)
    b = 0.01 * jax.random.normal(k2, (C_OUT,), jnp.float32)
    gamma = 1.0 + 0.02 * jax.random.normal(k3, (C_OUT,), jnp.float32)
    beta = 0.01 * jax.random.normal(k4, (C_OUT,), jnp.float32)
    x = jax.random.normal(k5, (B, C_IN, L), jnp.float32)

    params = prepare_params(w_torch, b, gamma, beta)
    fwd = jax.jit(functools.partial(dcgan_conv1d_forward, pool=POOL, tl=512))

    out = jax.block_until_ready(fwd(x, params))
    assert out.shape == (B, C_OUT, L // POOL), out.shape

    ref = reference_forward(x, w_torch, b, gamma, beta, pool=POOL)
    np.testing.assert_allclose(np.asarray(out, dtype=np.float32),
                               np.asarray(ref, dtype=np.float32),
                               atol=3e-2, rtol=3e-2)
    print("KERNEL_OK")
</pallas_src>

<mosaic_0001>
module attributes {stable_mosaic.version = 11 : i64} {
  func.func @_conv_pool_stats_kernel(%arg0: i32, %arg1: i32, %arg2: memref<1x2052x64xbf16, #tpu.memory_space<vmem>>, %arg3: memref<320x64xbf16, #tpu.memory_space<vmem>>, %arg4: memref<1x64x128xbf16, #tpu.memory_space<vmem>>, %arg5: memref<1x1x1x64xf32, #tpu.memory_space<vmem>>, %arg6: memref<1x1x1x64xf32, #tpu.memory_space<vmem>>, %arg7: memref<512x64xf32, #tpu.memory_space<vmem>>) attributes {dimension_semantics = [#tpu.dimension_semantics<parallel>, #tpu.dimension_semantics<parallel>], iteration_bounds = array<i64: 4, 4>, scalar_prefetch = 0 : i64, scratch_operands = 1 : i64, tpu.core_type = #tpu.core_type<tc>, window_params = [{transform_indices = @transform_0, window_bounds = array<i64: 1, 2052, 64>}, {pipeline_mode = #tpu.pipeline_mode<synchronous>, transform_indices = @transform_1, window_bounds = array<i64: 320, 64>}, {transform_indices = @transform_2, window_bounds = array<i64: 1, 64, 128>}, {transform_indices = @transform_3, window_bounds = array<i64: 1, 1, 1, 64>}, {transform_indices = @transform_4, window_bounds = array<i64: 1, 1, 1, 64>}]} {
    %c512_i32 = arith.constant 512 : i32
    %0 = arith.muli %arg1, %c512_i32 : i32
    %1 = tpu.assume_multiple %0, 512 : i32
    %c0 = arith.constant 0 : index
    %2 = arith.index_cast %1 : i32 to index
    %c0_0 = arith.constant 0 : index
    %3 = vector.load %arg2[%c0, %2, %c0_0] : memref<1x2052x64xbf16, #tpu.memory_space<vmem>>, vector<1x516x64xbf16>
    %4 = vector.shape_cast %3 : vector<1x516x64xbf16> to vector<516x64xbf16>
    %5 = vector.extract_strided_slice %4 {offsets = [0, 0], sizes = [512, 64], strides = [1, 1]} : vector<516x64xbf16> to vector<512x64xbf16>
    %6 = vector.extract_strided_slice %4 {offsets = [1, 0], sizes = [512, 64], strides = [1, 1]} : vector<516x64xbf16> to vector<512x64xbf16>
    %7 = vector.extract_strided_slice %4 {offsets = [2, 0], sizes = [512, 64], strides = [1, 1]} : vector<516x64xbf16> to vector<512x64xbf16>
    %8 = vector.extract_strided_slice %4 {offsets = [3, 0], sizes = [512, 64], strides = [1, 1]} : vector<516x64xbf16> to vector<512x64xbf16>
    %9 = vector.extract_strided_slice %4 {offsets = [4, 0], sizes = [512, 64], strides = [1, 1]} : vector<516x64xbf16> to vector<512x64xbf16>
    %10 = tpu.concatenate %5, %6, %7, %8, %9 in 1 : vector<512x64xbf16>, vector<512x64xbf16>, vector<512x64xbf16>, vector<512x64xbf16>, vector<512x64xbf16> -> vector<512x320xbf16>
    %c0_1 = arith.constant 0 : index
    %c0_2 = arith.constant 0 : index
    %11 = vector.load %arg3[%c0_1, %c0_2] : memref<320x64xbf16, #tpu.memory_space<vmem>>, vector<320x64xbf16>
    %cst = arith.constant dense<0.000000e+00> : vector<512x64xf32>
    %12 = tpu.matmul %10, %11, %cst {dimension_numbers = #tpu.dot_dimension_numbers<[1], [0], [0], [1], [0, 0, 1, 1], [], []>} : vector<512x320xbf16>, vector<320x64xbf16>, vector<512x64xf32> -> vector<512x64xf32>
    %c0_3 = arith.constant 0 : index
    %c0_4 = arith.constant 0 : index
    %13 = vector.load %arg7[%c0_3, %c0_4] : memref<512x64xf32, #tpu.memory_space<vmem>>, vector<512x64xf32>
    tpu.vector_store %arg7[%c0_3, %c0_4], %12 {strides = array<i32>} : memref<512x64xf32, #tpu.memory_space<vmem>>, vector<512x64xf32>,
    %c0_5 = arith.constant 0 : index
    %c0_6 = arith.constant 0 : index
    %14 = tpu.strided_load %arg7[%c0_5, %c0_6] {strides = array<i32: 4, 1>} : memref<512x64xf32, #tpu.memory_space<vmem>>, vector<128x64xf32>
    %c1 = arith.constant 1 : index
    %c0_7 = arith.constant 0 : index
    %15 = tpu.strided_load %arg7[%c1, %c0_7] {strides = array<i32: 4, 1>} : memref<512x64xf32, #tpu.memory_space<vmem>>, vector<128x64xf32>
    %16 = arith.maximumf %14, %15 : vector<128x64xf32>
    %c2 = arith.constant 2 : index
    %c0_8 = arith.constant 0 : index
    %17 = tpu.strided_load %arg7[%c2, %c0_8] {strides = array<i32: 4, 1>} : memref<512x64xf32, #tpu.memory_space<vmem>>, vector<128x64xf32>
    %18 = arith.maximumf %16, %17 : vector<128x64xf32>
    %c3 = arith.constant 3 : index
    %c0_9 = arith.constant 0 : index
    %19 = tpu.strided_load %arg7[%c3, %c0_9] {strides = array<i32: 4, 1>} : memref<512x64xf32, #tpu.memory_space<vmem>>, vector<128x64xf32>
    %20 = arith.maximumf %18, %19 : vector<128x64xf32>
    %cst_10 = arith.constant dense<0.000000e+00> : vector<64xf32>
    %21 = vector.multi_reduction <add>, %20, %cst_10 [0] : vector<128x64xf32> to vector<64xf32>
    %22 = vector.shape_cast %21 : vector<64xf32> to vector<1x1x1x64xf32>
    %c0_11 = arith.constant 0 : index
    %c0_12 = arith.constant 0 : index
    %c0_13 = arith.constant 0 : index
    %c0_14 = arith.constant 0 : index
    %23 = vector.load %arg5[%c0_11, %c0_12, %c0_13, %c0_14] : memref<1x1x1x64xf32, #tpu.memory_space<vmem>>, vector<1x1x1x64xf32>
    tpu.vector_store %arg5[%c0_11, %c0_12, %c0_13, %c0_14], %22 {strides = array<i32>} : memref<1x1x1x64xf32, #tpu.memory_space<vmem>>, vector<1x1x1x64xf32>,
    %24 = arith.mulf %20, %20 : vector<128x64xf32>
    %cst_15 = arith.constant dense<0.000000e+00> : vector<64xf32>
    %25 = vector.multi_reduction <add>, %24, %cst_15 [0] : vector<128x64xf32> to vector<64xf32>
    %26 = vector.shape_cast %25 : vector<64xf32> to vector<1x1x1x64xf32>
    %c0_16 = arith.constant 0 : index
    %c0_17 = arith.constant 0 : index
    %c0_18 = arith.constant 0 : index
    %c0_19 = arith.constant 0 : index
    %27 = vector.load %arg6[%c0_16, %c0_17, %c0_18, %c0_19] : memref<1x1x1x64xf32, #tpu.memory_space<vmem>>, vector<1x1x1x64xf32>
    tpu.vector_store %arg6[%c0_16, %c0_17, %c0_18, %c0_19], %26 {strides = array<i32>} : memref<1x1x1x64xf32, #tpu.memory_space<vmem>>, vector<1x1x1x64xf32>,
    %28 = tpu.transpose %20, [1, 0] : vector<128x64xf32> -> vector<64x128xf32>
    %29 = arith.truncf %28 : vector<64x128xf32> to vector<64x128xbf16>
    %c0_20 = arith.constant 0 : index
    %c0_21 = arith.constant 0 : index
    %c0_22 = arith.constant 0 : index
    %30 = vector.load %arg4[%c0_20, %c0_21, %c0_22] : memref<1x64x128xbf16, #tpu.memory_space<vmem>>, vector<1x64x128xbf16>
    %31 = vector.shape_cast %30 : vector<1x64x128xbf16> to vector<64x128xbf16>
    %32 = vector.shape_cast %29 : vector<64x128xbf16> to vector<1x64x128xbf16>
    tpu.vector_store %arg4[%c0_20, %c0_21, %c0_22], %32 {strides = array<i32>} : memref<1x64x128xbf16, #tpu.memory_space<vmem>>, vector<1x64x128xbf16>,
    return
  }
  func.func @transform_0(%arg0: i32, %arg1: i32) -> (i32, i32, i32) {
    %c0_i32 = arith.constant 0 : i32
    %c0_i32_0 = arith.constant 0 : i32
    %c0_i32_1 = arith.constant 0 : i32
    return %arg0, %c0_i32, %c0_i32_0 : i32, i32, i32
  }
  func.func @transform_1(%arg0: i32, %arg1: i32) -> (i32, i32) {
    %c0_i32 = arith.constant 0 : i32
    %c0_i32_0 = arith.constant 0 : i32
    %c0_i32_1 = arith.constant 0 : i32
    return %c0_i32, %c0_i32_0 : i32, i32
  }
  func.func @transform_2(%arg0: i32, %arg1: i32) -> (i32, i32, i32) {
    %c0_i32 = arith.constant 0 : i32
    %c0_i32_0 = arith.constant 0 : i32
    return %arg0, %c0_i32, %arg1 : i32, i32, i32
  }
  func.func @transform_3(%arg0: i32, %arg1: i32) -> (i32, i32, i32, i32) {
    %c0_i32 = arith.constant 0 : i32
    %c0_i32_0 = arith.constant 0 : i32
    %c0_i32_1 = arith.constant 0 : i32
    return %arg0, %arg1, %c0_i32, %c0_i32_0 : i32, i32, i32, i32
  }
  func.func @transform_4(%arg0: i32, %arg1: i32) -> (i32, i32, i32, i32) {
    %c0_i32 = arith.constant 0 : i32
    %c0_i32_0 = arith.constant 0 : i32
    %c0_i32_1 = arith.constant 0 : i32
    return %arg0, %arg1, %c0_i32, %c0_i32_0 : i32, i32, i32, i32
  }
}

module attributes {stable_mosaic.version = 11 : i64} {
  func.func @_bn_leaky_kernel(%arg0: i32, %arg1: i32, %arg2: memref<1x64x128xbf16, #tpu.memory_space<vmem>>, %arg3: memref<64x1xf32, #tpu.memory_space<vmem>>, %arg4: memref<64x1xf32, #tpu.memory_space<vmem>>, %arg5: memref<1x64x128xf32, #tpu.memory_space<vmem>>) attributes {dimension_semantics = [#tpu.dimension_semantics<parallel>, #tpu.dimension_semantics<parallel>], iteration_bounds = array<i64: 4, 4>, scalar_prefetch = 0 : i64, scratch_operands = 0 : i64, tpu.core_type = #tpu.core_type<tc>, window_params = [{transform_indices = @transform_0, window_bounds = array<i64: 1, 64, 128>}, {pipeline_mode = #tpu.pipeline_mode<synchronous>, transform_indices = @transform_1, window_bounds = array<i64: 64, 1>}, {pipeline_mode = #tpu.pipeline_mode<synchronous>, transform_indices = @transform_2, window_bounds = array<i64: 64, 1>}, {transform_indices = @transform_3, window_bounds = array<i64: 1, 64, 128>}]} {
    %c0 = arith.constant 0 : index
    %c0_0 = arith.constant 0 : index
    %c0_1 = arith.constant 0 : index
    %0 = vector.load %arg2[%c0, %c0_0, %c0_1] : memref<1x64x128xbf16, #tpu.memory_space<vmem>>, vector<1x64x128xbf16>
    %1 = vector.shape_cast %0 : vector<1x64x128xbf16> to vector<64x128xbf16>
    %2 = arith.extf %1 : vector<64x128xbf16> to vector<64x128xf32>
    %c0_2 = arith.constant 0 : index
    %c0_3 = arith.constant 0 : index
    %3 = vector.load %arg3[%c0_2, %c0_3] : memref<64x1xf32, #tpu.memory_space<vmem>>, vector<64x1xf32>
    %4 = vector.broadcast %3 : vector<64x1xf32> to vector<64x128xf32>
    %5 = arith.mulf %2, %4 : vector<64x128xf32>
    %c0_4 = arith.constant 0 : index
    %c0_5 = arith.constant 0 : index
    %6 = vector.load %arg4[%c0_4, %c0_5] : memref<64x1xf32, #tpu.memory_space<vmem>>, vector<64x1xf32>
    %7 = vector.broadcast %6 : vector<64x1xf32> to vector<64x128xf32>
    %8 = arith.addf %5, %7 : vector<64x128xf32>
    %cst = arith.constant 0.000000e+00 : f32
    %9 = vector.broadcast %cst : f32 to vector<64x128xf32>
    %10 = arith.cmpf oge, %8, %9 : vector<64x128xf32>
    %cst_6 = arith.constant 2.000000e-01 : f32
    %11 = vector.broadcast %cst_6 : f32 to vector<64x128xf32>
    %12 = arith.mulf %11, %8 : vector<64x128xf32>
    %13 = arith.select %10, %8, %12 : vector<64x128xi1>, vector<64x128xf32>
    %c0_7 = arith.constant 0 : index
    %c0_8 = arith.constant 0 : index
    %c0_9 = arith.constant 0 : index
    %14 = vector.load %arg5[%c0_7, %c0_8, %c0_9] : memref<1x64x128xf32, #tpu.memory_space<vmem>>, vector<1x64x128xf32>
    %15 = vector.shape_cast %14 : vector<1x64x128xf32> to vector<64x128xf32>
    %16 = vector.shape_cast %13 : vector<64x128xf32> to vector<1x64x128xf32>
    tpu.vector_store %arg5[%c0_7, %c0_8, %c0_9], %16 {strides = array<i32>} : memref<1x64x128xf32, #tpu.memory_space<vmem>>, vector<1x64x128xf32>,
    return
  }
  func.func @transform_0(%arg0: i32, %arg1: i32) -> (i32, i32, i32) {
    %c0_i32 = arith.constant 0 : i32
    %c0_i32_0 = arith.constant 0 : i32
    return %arg0, %c0_i32, %arg1 : i32, i32, i32
  }
  func.func @transform_1(%arg0: i32, %arg1: i32) -> (i32, i32) {
    %c0_i32 = arith.constant 0 : i32
    %c0_i32_0 = arith.constant 0 : i32
    %c0_i32_1 = arith.constant 0 : i32
    return %c0_i32, %c0_i32_0 : i32, i32
  }
  func.func @transform_2(%arg0: i32, %arg1: i32) -> (i32, i32) {
    %c0_i32 = arith.constant 0 : i32
    %c0_i32_0 = arith.constant 0 : i32
    %c0_i32_1 = arith.constant 0 : i32
    return %c0_i32, %c0_i32_0 : i32, i32
  }
  func.func @transform_3(%arg0: i32, %arg1: i32) -> (i32, i32, i32) {
    %c0_i32 = arith.constant 0 : i32
    %c0_i32_0 = arith.constant 0 : i32
    return %arg0, %c0_i32, %arg1 : i32, i32, i32
  }
}

</mosaic_0001>

<llo_original>
// kernel: dcgan_conv1d_forward.3
$region0: #{dcgan_conv1d_forward.3}
  #allocation0 [shape = 'u32[]', space=smem, size = 0x4, offset = 0x4, fixed_abs, tag = 'smem constant byte address 0x4 - core index']
  #allocation1 [shape = 'u32[144,128]{1,0:T(1,128)}', space=vmem, size = 0x12000, scoped, tag = 'internal scratch']
  %s0 = inlined_call_operand.vmem [shape: bf16[4,64,512], index: 0, kind: input, shape index: {}]
  %s1 = inlined_call_operand.vmem [shape: f32[64,1], index: 1, kind: input, shape index: {}]
  %s2 = inlined_call_operand.vmem [shape: f32[64,1], index: 2, kind: input, shape index: {}]
  %s3 = inlined_call_operand.hbm [shape: f32[4,64,512], index: 3, kind: output, shape index: {}]
  %s4 = sld [smem:[#allocation0]]
  $region86: #{dcgan_conv1d_forward.3} parent=0
    _
  %s6 = ssub.s32 1, %s4
  %s7 = scalar_select 0, %s6, %s4
  $region1: #{dcgan_conv1d_forward.3} parent=0
    #allocation2 [shape = 'u8[32768]{0}', space=vmem, size = 0x8000, scoped, tag = 'input window, operand 0']
    #allocation3 [shape = 'u8[65536]{0}', space=vmem, size = 0x10000, scoped, tag = 'output window, operand 0']
    #allocation4 [shape = 's32[2]{0}', space=sflag, size = 0x8, scoped, tag = 'scoped memory for dcgan_conv1d_forward.3']
    %8 = vsyncpa [#allocation4], 0
    %s9 = scalar_lea.sflag [#allocation4], 1
    %10 = vsyncpa %s9, 0
    loop: start=0, step=1, limit=18
    $region2: #{dcgan_conv1d_forward.3} parent=1 // loop_pre_header
      _
    $region3: #{dcgan_conv1d_forward.3} parent=1 // loop_header
      %s12 = sphi 0, %s16
      %p13 = scmp.ge.s32.totalorder %s12, 18
      %s19 = sphi 0, %s31
      %s20 = sphi 0, %s27
      %s21 = sphi 0, %s19
      %s22 = sphi 0, %s20
      %s23 = sphi 0, %s21
      %s24 = sphi 0, %s22
      %s36 = sphi 0, %s38
      %s39 = sphi 0, %s36
      %s40 = sphi 0, %s39
      %s56 = sphi 0, %s40
      %s60 = sphi 0, %s60
      %s62 = sphi 0, %s60
      %s63 = sphi 0, %s62
      %s77 = sphi 0, %s63
      %s81 = sphi 0, %s81
      %s83 = sphi 0, %s81
      %s84 = sphi 0, %s83
      %s98 = sphi 0, %s84
      %s106 = sphi 0, %s108
      %s109 = sphi 0, %s106
      %s110 = sphi 0, %s109
      %s126 = sphi 0, %s110
    $region4: #{dcgan_conv1d_forward.3} parent=1 // loop_header_branch
      %15 = sbr.rel (%p13) target = $region8
    $region5: #{dcgan_conv1d_forward.3} parent=1 // loop_body
      %s17 = ssub.s32 %s12, 1
      %s18 = ssub.s32 %s12, 2
      %s25 = sadd.s32 1, %s20
      %p26 = scmp.ge.s32.totalorder %s25, 4
      %s27 = scalar_select %p26, 0, %s25
      %s28 = sadd.s32 1, %s19
      %s29 = scalar_select %p26, %s28, %s19
      %p30 = scmp.ge.s32.totalorder %s29, 4
      %s31 = scalar_select %p30, 0, %s29
      %s32 = ssub.s32 %s19, %s31
      %s33 = ssub.s32 %s20, %s27
      %s34 = sor.u32 %s32, %s33
      %p35 = scmp.eq.s32.totalorder %s34, 0
      %s37 = sadd.s32 %s36, 1
      %s38 = scalar_select %p35, %s36, %s37
      %p41 = pneg %p35
      %p42 = scmp.eq.s32.totalorder %s12, 15
      %p43 = por %p41, %p42
      %p44 = scmp.ne.s32.totalorder %s36, %s39
      %p45 = scmp.eq.s32.totalorder %s12, 0
      %p46 = por %p44, %p45
      %p47 = scmp.ne.s32.totalorder %s36, %s39
      %p48 = scmp.eq.s32.totalorder %s17, 15
      %p49 = por %p47, %p48
      %p50 = scmp.ne.s32.totalorder %s39, %s40
      %p51 = scmp.eq.s32.totalorder %s17, 0
      %p52 = por %p50, %p51
      %p53 = scmp.ne.s32.totalorder %s39, %s40
      %p54 = scmp.eq.s32.totalorder %s18, 15
      %p55 = por %p53, %p54
      %p57 = scmp.ne.s32.totalorder %s40, %s56
      %p58 = scmp.eq.s32.totalorder %s18, 0
      %p59 = por %p57, %p58
      %s61 = sadd.s32 %s60, 1
      %p64 = scmp.eq.s32.totalorder %s12, 15
      %p65 = scmp.ne.s32.totalorder %s60, %s62
      %p66 = scmp.eq.s32.totalorder %s12, 0
      %p67 = por %p65, %p66
      %p68 = scmp.ne.s32.totalorder %s60, %s62
      %p69 = scmp.eq.s32.totalorder %s17, 15
      %p70 = por %p68, %p69
      %p71 = scmp.ne.s32.totalorder %s62, %s63
      %p72 = scmp.eq.s32.totalorder %s17, 0
      %p73 = por %p71, %p72
      %p74 = scmp.ne.s32.totalorder %s62, %s63
      %p75 = scmp.eq.s32.totalorder %s18, 15
      %p76 = por %p74, %p75
      %p78 = scmp.ne.s32.totalorder %s63, %s77
      %p79 = scmp.eq.s32.totalorder %s18, 0
      %p80 = por %p78, %p79
      %s82 = sadd.s32 %s81, 1
      %p85 = scmp.eq.s32.totalorder %s12, 15
      %p86 = scmp.ne.s32.totalorder %s81, %s83
      %p87 = scmp.eq.s32.totalorder %s12, 0
      %p88 = por %p86, %p87
      %p89 = scmp.ne.s32.totalorder %s81, %s83
      %p90 = scmp.eq.s32.totalorder %s17, 15
      %p91 = por %p89, %p90
      %p92 = scmp.ne.s32.totalorder %s83, %s84
      %p93 = scmp.eq.s32.totalorder %s17, 0
      %p94 = por %p92, %p93
      %p95 = scmp.ne.s32.totalorder %s83, %s84
      %p96 = scmp.eq.s32.totalorder %s18, 15
      %p97 = por %p95, %p96
      %p99 = scmp.ne.s32.totalorder %s84, %s98
      %p100 = scmp.eq.s32.totalorder %s18, 0
      %p101 = por %p99, %p100
      %s102 = ssub.s32 %s19, %s31
      %s103 = ssub.s32 %s20, %s27
      %s104 = sor.u32 %s102, %s103
      %p105 = scmp.eq.s32.totalorder %s104, 0
      %s107 = sadd.s32 %s106, 1
      %s108 = scalar_select %p105, %s106, %s107
      %p111 = pneg %p105
      %p112 = scmp.eq.s32.totalorder %s12, 15
      %p113 = por %p111, %p112
      %p114 = scmp.ne.s32.totalorder %s106, %s109
      %p115 = scmp.eq.s32.totalorder %s12, 0
      %p116 = por %p114, %p115
      %p117 = scmp.ne.s32.totalorder %s106, %s109
      %p118 = scmp.eq.s32.totalorder %s17, 15
      %p119 = por %p117, %p118
      %p120 = scmp.ne.s32.totalorder %s109, %s110
      %p121 = scmp.eq.s32.totalorder %s17, 0
      %p122 = por %p120, %p121
      %p123 = scmp.ne.s32.totalorder %s109, %s110
      %p124 = scmp.eq.s32.totalorder %s18, 15
      %p125 = por %p123, %p124
      %p127 = scmp.ne.s32.totalorder %s110, %s126
      %p128 = scmp.eq.s32.totalorder %s18, 0
      %p129 = por %p127, %p128
      %p130 = scmp.le.s32.totalorder 1, %s12
      %p131 = scmp.lt.s32.totalorder %s12, 17
      %p132 = pnand %p130, %p131
      %p133 = pneg %p132
      // Predicated region
      $region9: #{dcgan_conv1d_forward.3} parent=5 // pred_check
        _
      $region10: #{dcgan_conv1d_forward.3} parent=5 // pred_check_branch
        %135 = sbr.rel (%p132) target = $region12
      $region11: #{dcgan_conv1d_forward.3} parent=5 // pred_region
        %s136 = ssub.s32 %s12, 1
        // Predicated region
        $region13: #{dcgan_conv1d_forward.3} parent=11 // pred_check
          %p137 = pneg %p73
        $region14: #{dcgan_conv1d_forward.3} parent=11 // pred_check_branch
          %139 = sbr.rel (%p137) target = $region16
        $region15: #{dcgan_conv1d_forward.3} parent=11 // pred_region
          _
        $region16: #{dcgan_conv1d_forward.3} parent=11 // pred_fallthru
          _
        // Predicated region
        $region17: #{dcgan_conv1d_forward.3} parent=11 // pred_check
          %p140 = pneg %p94
        $region18: #{dcgan_conv1d_forward.3} parent=11 // pred_check_branch
          %142 = sbr.rel (%p140) target = $region20
        $region19: #{dcgan_conv1d_forward.3} parent=11 // pred_region
          _
        $region20: #{dcgan_conv1d_forward.3} parent=11 // pred_fallthru
          _
      $region12: #{dcgan_conv1d_forward.3} parent=5 // pred_fallthru
        _
      %p143 = scmp.lt.s32.totalorder %s12, 16
      // Predicated region
      $region21: #{dcgan_conv1d_forward.3} parent=5 // pred_check
        %p144 = pneg %p143
      $region22: #{dcgan_conv1d_forward.3} parent=5 // pred_check_branch
        %146 = sbr.rel (%p144) target = $region24
      $region23: #{dcgan_conv1d_forward.3} parent=5 // pred_region
        // Predicated region
        $region25: #{dcgan_conv1d_forward.3} parent=23 // pred_check
          %p147 = pneg %p46
        $region26: #{dcgan_conv1d_forward.3} parent=23 // pred_check_branch
          %149 = sbr.rel (%p147) target = $region28
        $region27: #{dcgan_conv1d_forward.3} parent=23 // pred_region
          %s150 = sand.u32 %s36, 1
          %s151 = sand.u32 %s36, 1
          %s152 = smul.addr %s151, 32
          %s153 = scalar_lea.vmem [#allocation2], %s152
          %s154 = smul.addr %s19, 32
          %s155 = sadd.s32 %s20, %s154
          %s156 = smul.addr %s155, 4
          %s157 = scalar_lea.vmem %s0, %s156
          // Predicated region
          $region29: #{dcgan_conv1d_forward.3} parent=27 // pred_check
            _
          $region30: #{dcgan_conv1d_forward.3} parent=27 // pred_check_branch
            %159 = sbr.rel (0) target = $region32
          $region31: #{dcgan_conv1d_forward.3} parent=27 // pred_region
            // Predicated region
            $region33: #{dcgan_conv1d_forward.3} parent=31 // pred_check
              _
            $region34: #{dcgan_conv1d_forward.3} parent=31 // pred_check_branch
              %161 = sbr.rel target = $region36
            $region35: #{dcgan_conv1d_forward.3} parent=31 // pred_region
              // Predicated region
              $region48: #{dcgan_conv1d_forward.3} parent=35 // pred_check
                _
              $region49: #{dcgan_conv1d_forward.3} parent=35 // pred_check_branch
                %191 = sbr.rel (0) target = $region51
              $region50: #{dcgan_conv1d_forward.3} parent=35 // pred_region
                loop: start=0, step=1, limit=1
                $region52: #{dcgan_conv1d_forward.3} parent=50 // loop_pre_header
                  _
                $region53: #{dcgan_conv1d_forward.3} parent=50 // loop_header
                  %s193 = sphi 0, %s197
                  %p194 = scmp.ge.s32.totalorder %s193, 1
                  %s198 = sphi %s157, %s157
                  %s199 = sphi %s153, %s153
                $region54: #{dcgan_conv1d_forward.3} parent=50 // loop_header_branch
                  %196 = sbr.rel (%p194) target = $region58
                $region55: #{dcgan_conv1d_forward.3} parent=50 // loop_body
                  _
                $region56: #{dcgan_conv1d_forward.3} parent=50 // loop_footer
                  %s197 = sadd.s32 1, %s193
                $region57: #{dcgan_conv1d_forward.3} parent=50 // loop_footer_branch
                  %192 = sbr.rel target = $region53
                $region58: #{dcgan_conv1d_forward.3} parent=50 // loop_exit
                  _
                %s201 = ssub.s32 16, 1
                loop: start=0, step=1, limit=1
                $region59: #{dcgan_conv1d_forward.3} parent=50 // loop_pre_header
                  _
                $region60: #{dcgan_conv1d_forward.3} parent=50 // loop_header
                  %s203 = sphi 0, %s207
                  %p204 = scmp.ge.s32.totalorder %s203, 1
                  %s208 = sphi %s157, %s157
                  %s209 = sphi %s153, %s153
                $region61: #{dcgan_conv1d_forward.3} parent=50 // loop_header_branch
                  %206 = sbr.rel (%p204) target = $region65
                $region62: #{dcgan_conv1d_forward.3} parent=50 // loop_body
                  %v210 = vld [vmem:[%s208] sm:%s201]
                  %211 = vst [vmem:[%s209] sm:%s201] %v210
                  %v212 = vld [vmem:[%s208 + $0x10] sm:%s201]
                  %213 = vst [vmem:[%s209 + $0x4] sm:%s201] %v212
                  %v214 = vld [vmem:[%s208 + $0x20] sm:%s201]
                  %215 = vst [vmem:[%s209 + $0x8] sm:%s201] %v214
                  %v216 = vld [vmem:[%s208 + $0x30] sm:%s201]
                  %217 = vst [vmem:[%s209 + $0xc] sm:%s201] %v216
                  %v218 = vld [vmem:[%s208 + $0x40] sm:%s201]
                  %219 = vst [vmem:[%s209 + $0x10] sm:%s201] %v218
                  %v220 = vld [vmem:[%s208 + $0x50] sm:%s201]
                  %221 = vst [vmem:[%s209 + $0x14] sm:%s201] %v220
                  %v222 = vld [vmem:[%s208 + $0x60] sm:%s201]
                  %223 = vst [vmem:[%s209 + $0x18] sm:%s201] %v222
                  %v224 = vld [vmem:[%s208 + $0x70] sm:%s201]
                  %225 = vst [vmem:[%s209 + $0x1c] sm:%s201] %v224
                $region63: #{dcgan_conv1d_forward.3} parent=50 // loop_footer
                  %s207 = sadd.s32 1, %s203
                $region64: #{dcgan_conv1d_forward.3} parent=50 // loop_footer_branch
                  %202 = sbr.rel target = $region60
                $region65: #{dcgan_conv1d_forward.3} parent=50 // loop_exit
                  _
              $region51: #{dcgan_conv1d_forward.3} parent=35 // pred_fallthru
                _
            $region36: #{dcgan_conv1d_forward.3} parent=31 // pred_fallthru
              _
            // Predicated region
            $region37: #{dcgan_conv1d_forward.3} parent=31 // pred_check
              _
            $region38: #{dcgan_conv1d_forward.3} parent=31 // pred_check_branch
              %163 = sbr.rel (0) target = $region40
            $region39: #{dcgan_conv1d_forward.3} parent=31 // pred_region
              %s165 = ssub.s32 16, 1
              loop: start=0, step=1, limit=1
              $region41: #{dcgan_conv1d_forward.3} parent=39 // loop_pre_header
                _
              $region42: #{dcgan_conv1d_forward.3} parent=39 // loop_header
                %s167 = sphi 0, %s171
                %p168 = scmp.ge.s32.totalorder %s167, 1
                %s172 = sphi %s157, %s157
                %s173 = sphi %s153, %s153
              $region43: #{dcgan_conv1d_forward.3} parent=39 // loop_header_branch
                %170 = sbr.rel (%p168) target = $region47
              $region44: #{dcgan_conv1d_forward.3} parent=39 // loop_body
                %v174 = vld [vmem:[%s172] sm:%s165]
                %175 = vst [vmem:[%s173] sm:%s165] %v174
                %v176 = vld [vmem:[%s172 + $0x10] sm:%s165]
                %177 = vst [vmem:[%s173 + $0x4] sm:%s165] %v176
                %v178 = vld [vmem:[%s172 + $0x20] sm:%s165]
                %179 = vst [vmem:[%s173 + $0x8] sm:%s165] %v178
                %v180 = vld [vmem:[%s172 + $0x30] sm:%s165]
                %181 = vst [vmem:[%s173 + $0xc] sm:%s165] %v180
                %v182 = vld [vmem:[%s172 + $0x40] sm:%s165]
                %183 = vst [vmem:[%s173 + $0x10] sm:%s165] %v182
                %v184 = vld [vmem:[%s172 + $0x50] sm:%s165]
                %185 = vst [vmem:[%s173 + $0x14] sm:%s165] %v184
                %v186 = vld [vmem:[%s172 + $0x60] sm:%s165]
                %187 = vst [vmem:[%s173 + $0x18] sm:%s165] %v186
                %v188 = vld [vmem:[%s172 + $0x70] sm:%s165]
                %189 = vst [vmem:[%s173 + $0x1c] sm:%s165] %v188
              $region45: #{dcgan_conv1d_forward.3} parent=39 // loop_footer
                %s171 = sadd.s32 1, %s167
              $region46: #{dcgan_conv1d_forward.3} parent=39 // loop_footer_branch
                %166 = sbr.rel target = $region42
              $region47: #{dcgan_conv1d_forward.3} parent=39 // loop_exit
                _
            $region40: #{dcgan_conv1d_forward.3} parent=31 // pred_fallthru
              _
          $region32: #{dcgan_conv1d_forward.3} parent=27 // pred_fallthru
            _
          %226 = vnop
        $region28: #{dcgan_conv1d_forward.3} parent=23 // pred_fallthru
          _
      $region24: #{dcgan_conv1d_forward.3} parent=5 // pred_fallthru
        _
      %p227 = scmp.le.s32.totalorder 1, %s12
      %p228 = scmp.lt.s32.totalorder %s12, 17
      %p229 = pnand %p227, %p228
      %p230 = pneg %p229
      // Predicated region
      $region66: #{dcgan_conv1d_forward.3} parent=5 // pred_check
        _
      $region67: #{dcgan_conv1d_forward.3} parent=5 // pred_check_branch
        %232 = sbr.rel (%p229) target = $region69
      $region68: #{dcgan_conv1d_forward.3} parent=5 // pred_region
        %s233 = ssub.s32 %s12, 1
        %s234 = sand.u32 %s39, 1
        %s235 = sand.u32 %s39, 1
        %s236 = smul.addr %s235, 32
        %s237 = scalar_lea.vmem [#allocation2], %s236
        // Predicated region
        $region70: #{dcgan_conv1d_forward.3} parent=68 // pred_check
          %p238 = pneg %p52
        $region71: #{dcgan_conv1d_forward.3} parent=68 // pred_check_branch
          %240 = sbr.rel (%p238) target = $region73
        $region72: #{dcgan_conv1d_forward.3} parent=68 // pred_region
          _
        $region73: #{dcgan_conv1d_forward.3} parent=68 // pred_fallthru
          _
        %s241 = sand.u32 %s39, 1
        %s242 = sand.u32 %s39, 1
        %s243 = smul.addr %s242, 32
        %s244 = scalar_lea.vmem [#allocation2], %s243
        %p245 = pneg %p52
        %p246 = pneg %p49
        %p247 = pneg %p73
        %p248 = pneg %p70
        %p249 = pneg %p94
        %p250 = pneg %p91
        %p251 = pneg %p122
        %p252 = pneg %p119
        %s253 = sand.u32 %s109, 1
        %s254 = scalar_lea.sflag [#allocation4], %s253
        %s255 = sand.u32 %s109, 1
        %s256 = smul.addr %s255, 64
        %s257 = scalar_lea.vmem [#allocation3], %s256
        %v258 = vld [vmem:[%s237] sm:$0xf]
        %v259 = vld [vmem:[%s237 + $0x4] sm:$0xf]
        %v260 = vld [vmem:[%s237 + $0x8] sm:$0xf]
        %v261 = vld [vmem:[%s237 + $0xc] sm:$0xf]
        %v262 = vld [vmem:[%s237 + $0x10] sm:$0xf]
        %v263 = vld [vmem:[%s237 + $0x14] sm:$0xf]
        %v264 = vld [vmem:[%s237 + $0x18] sm:$0xf]
        %v265 = vld [vmem:[%s237 + $0x1c] sm:$0xf]
        %v266 = vunpack.c.l.bf16 %v258
        %v267 = vunpack.c.l.bf16 %v259
        %v268 = vunpack.c.l.bf16 %v260
        %v269 = vunpack.c.l.bf16 %v261
        %v270 = vunpack.c.l.bf16 %v262
        %v271 = vunpack.c.l.bf16 %v263
        %v272 = vunpack.c.l.bf16 %v264
        %v273 = vunpack.c.l.bf16 %v265
        %v274 = vld [vmem:[%s1] sm:$0xff]
        %v275 = vld [vmem:[%s1 + $0x8] sm:$0xff]
        %v276 = vld [vmem:[%s1 + $0x10] sm:$0xff]
        %v277 = vld [vmem:[%s1 + $0x18] sm:$0xff]
        %v278 = vld [vmem:[%s1 + $0x20] sm:$0xff]
        %v279 = vld [vmem:[%s1 + $0x28] sm:$0xff]
        %v280 = vld [vmem:[%s1 + $0x30] sm:$0xff]
        %v281 = vld [vmem:[%s1 + $0x38] sm:$0xff]
        %283 = vset.pattern.permute.xlu0 0
        %284 = vperm.xlu0 %283, %v274
        %v285 = vpop.permute.xlu0 %284
        %288 = vset.pattern.permute.xlu0 0
        %289 = vperm.xlu0 %288, %v275
        %v290 = vpop.permute.xlu0 %289
        %293 = vset.pattern.permute.xlu0 0
        %294 = vperm.xlu0 %293, %v276
        %v295 = vpop.permute.xlu0 %294
        %298 = vset.pattern.permute.xlu0 0
        %299 = vperm.xlu0 %298, %v277
        %v300 = vpop.permute.xlu0 %299
        %303 = vset.pattern.permute.xlu0 0
        %304 = vperm.xlu0 %303, %v278
        %v305 = vpop.permute.xlu0 %304
        %308 = vset.pattern.permute.xlu0 0
        %309 = vperm.xlu0 %308, %v279
        %v310 = vpop.permute.xlu0 %309
        %313 = vset.pattern.permute.xlu0 0
        %314 = vperm.xlu0 %313, %v280
        %v315 = vpop.permute.xlu0 %314
        %318 = vset.pattern.permute.xlu0 0
        %319 = vperm.xlu0 %318, %v281
        %v320 = vpop.permute.xlu0 %319
        %v322 = vmul.f32 %v266, %v285
        %v323 = vmul.f32 %v267, %v290
        %v324 = vmul.f32 %v268, %v295
        %v325 = vmul.f32 %v269, %v300
        %v326 = vmul.f32 %v270, %v305
        %v327 = vmul.f32 %v271, %v310
        %v328 = vmul.f32 %v272, %v315
        %v329 = vmul.f32 %v273, %v320
        %v330 = vld [vmem:[%s2] sm:$0xff]
        %v331 = vld [vmem:[%s2 + $0x8] sm:$0xff]
        %v332 = vld [vmem:[%s2 + $0x10] sm:$0xff]
        %v333 = vld [vmem:[%s2 + $0x18] sm:$0xff]
        %v334 = vld [vmem:[%s2 + $0x20] sm:$0xff]
        %v335 = vld [vmem:[%s2 + $0x28] sm:$0xff]
        %v336 = vld [vmem:[%s2 + $0x30] sm:$0xff]
        %v337 = vld [vmem:[%s2 + $0x38] sm:$0xff]
        %339 = vset.pattern.permute.xlu0 0
        %340 = vperm.xlu0 %339, %v330
        %v341 = vpop.permute.xlu0 %340
        %344 = vset.pattern.permute.xlu0 0
        %345 = vperm.xlu0 %344, %v331
        %v346 = vpop.permute.xlu0 %345
        %349 = vset.pattern.permute.xlu0 0
        %350 = vperm.xlu0 %349, %v332
        %v351 = vpop.permute.xlu0 %350
        %354 = vset.pattern.permute.xlu0 0
        %355 = vperm.xlu0 %354, %v333
        %v356 = vpop.permute.xlu0 %355
        %359 = vset.pattern.permute.xlu0 0
        %360 = vperm.xlu0 %359, %v334
        %v361 = vpop.permute.xlu0 %360
        %364 = vset.pattern.permute.xlu0 0
        %365 = vperm.xlu0 %364, %v335
        %v366 = vpop.permute.xlu0 %365
        %369 = vset.pattern.permute.xlu0 0
        %370 = vperm.xlu0 %369, %v336
        %v371 = vpop.permute.xlu0 %370
        %374 = vset.pattern.permute.xlu0 0
        %375 = vperm.xlu0 %374, %v337
        %v376 = vpop.permute.xlu0 %375
        %v378 = vadd.f32 %v322, %v341
        %v379 = vadd.f32 %v323, %v346
        %v380 = vadd.f32 %v324, %v351
        %v381 = vadd.f32 %v325, %v356
        %v382 = vadd.f32 %v326, %v361
        %v383 = vadd.f32 %v327, %v366
        %v384 = vadd.f32 %v328, %v371
        %v385 = vadd.f32 %v329, %v376
        %vm386 = vcmp.ge.f32.partialorder %v378, 0.0
        %vm387 = vcmp.ge.f32.partialorder %v379, 0.0
        %vm388 = vcmp.ge.f32.partialorder %v380, 0.0
        %vm389 = vcmp.ge.f32.partialorder %v381, 0.0
        %vm390 = vcmp.ge.f32.partialorder %v382, 0.0
        %vm391 = vcmp.ge.f32.partialorder %v383, 0.0
        %vm392 = vcmp.ge.f32.partialorder %v384, 0.0
        %vm393 = vcmp.ge.f32.partialorder %v385, 0.0
        %v394 = vmul.f32 %v378, 0.2
        %v395 = vmul.f32 %v379, 0.2
        %v396 = vmul.f32 %v380, 0.2
        %v397 = vmul.f32 %v381, 0.2
        %v398 = vmul.f32 %v382, 0.2
        %v399 = vmul.f32 %v383, 0.2
        %v400 = vmul.f32 %v384, 0.2
        %v401 = vmul.f32 %v385, 0.2
        %v402 = vsel %vm386, %v378, %v394
        %v403 = vsel %vm387, %v379, %v395
        %v404 = vsel %vm388, %v380, %v396
        %v405 = vsel %vm389, %v381, %v397
        %v406 = vsel %vm390, %v382, %v398
        %v407 = vsel %vm391, %v383, %v399
        %v408 = vsel %vm392, %v384, %v400
        %v409 = vsel %vm393, %v385, %v401
        %410 = vst [vmem:[%s257] sm:$0xff] %v402
        %411 = vst [vmem:[%s257 + $0x8] sm:$0xff] %v403
        %412 = vst [vmem:[%s257 + $0x10] sm:$0xff] %v404
        %413 = vst [vmem:[%s257 + $0x18] sm:$0xff] %v405
        %414 = vst [vmem:[%s257 + $0x20] sm:$0xff] %v406
        %415 = vst [vmem:[%s257 + $0x28] sm:$0xff] %v407
        %416 = vst [vmem:[%s257 + $0x30] sm:$0xff] %v408
        %417 = vst [vmem:[%s257 + $0x38] sm:$0xff] %v409
        %s418 = sand.u32 %s109, 1
        %s419 = scalar_lea.sflag [#allocation4], %s418
        %s420 = sand.u32 %s109, 1
        %s421 = smul.addr %s420, 64
        %s422 = scalar_lea.vmem [#allocation3], %s421
        // Predicated region
        $region74: #{dcgan_conv1d_forward.3} parent=68 // pred_check
          %p423 = pneg %p119
        $region75: #{dcgan_conv1d_forward.3} parent=68 // pred_check_branch
          %425 = sbr.rel (%p423) target = $region77
        $region76: #{dcgan_conv1d_forward.3} parent=68 // pred_region
          %s427 = ssub.s32 1024, 1024
          %428 = vsyncadd %s419, %s427
          %s429 = smul.addr %s21, 32
          %s430 = sadd.s32 %s22, %s429
          %s431 = smul.addr %s430, 128
          %s432 = scalar_lea.hbm %s3, %s431
          %s433 = sshll.u32 %s422, 4
          %s434 = int_to_ptr.vmem [resolvable:$true] %s433
          %439 = dma.vmem_to_hbm [thread:$0]  %s434, 1024, %s432, %s419, 128, 512, 8
        $region77: #{dcgan_conv1d_forward.3} parent=68 // pred_fallthru
          _
      $region69: #{dcgan_conv1d_forward.3} parent=5 // pred_fallthru
        _
      %p440 = scmp.le.s32.totalorder 2, %s12
      // Predicated region
      $region78: #{dcgan_conv1d_forward.3} parent=5 // pred_check
        %p441 = pneg %p440
      $region79: #{dcgan_conv1d_forward.3} parent=5 // pred_check_branch
        %443 = sbr.rel (%p441) target = $region81
      $region80: #{dcgan_conv1d_forward.3} parent=5 // pred_region
        %s444 = ssub.s32 %s12, 2
        // Predicated region
        $region82: #{dcgan_conv1d_forward.3} parent=80 // pred_check
          %p445 = pneg %p125
        $region83: #{dcgan_conv1d_forward.3} parent=80 // pred_check_branch
          %447 = sbr.rel (%p445) target = $region85
        $region84: #{dcgan_conv1d_forward.3} parent=80 // pred_region
          %s448 = sand.u32 %s110, 1
          %s449 = scalar_lea.sflag [#allocation4], %s448
          %s450 = sand.u32 %s110, 1
          %s451 = smul.addr %s450, 64
          %s452 = scalar_lea.vmem [#allocation3], %s451
          %453 = dma.done %s449, 1024
        $region85: #{dcgan_conv1d_forward.3} parent=80 // pred_fallthru
          _
      $region81: #{dcgan_conv1d_forward.3} parent=5 // pred_fallthru
        _
    $region6: #{dcgan_conv1d_forward.3} parent=1 // loop_footer
      %s16 = sadd.s32 1, %s12
    $region7: #{dcgan_conv1d_forward.3} parent=1 // loop_footer_branch
      %11 = sbr.rel target = $region3
    $region8: #{dcgan_conv1d_forward.3} parent=1 // loop_exit
      _
    %454 = vsyncpa [#allocation4], 1
    %s455 = scalar_lea.sflag [#allocation4], 1
    %456 = vsyncpa %s455, 1

// kernel: dcgan_conv1d_forward.2
$region0: #{dcgan_conv1d_forward.2}
  #allocation0 [shape = 'u32[]', space=smem, size = 0x4, offset = 0x4, fixed_abs, tag = 'smem constant byte address 0x4 - core index']
  #allocation1 [shape = 'u32[144,128]{1,0:T(1,128)}', space=vmem, size = 0x12000, scoped, tag = 'internal scratch']
  #allocation2 [shape = 'f32[512,64]{1,0:T(8,128)}', space=vmem, size = 0x40000, scoped, tag = 'scratch operand']
  %s0 = inlined_call_operand.vmem [shape: bf16[4,2052,64], index: 0, kind: input, shape index: {}]
  %s1 = inlined_call_operand.vmem [shape: bf16[320,64], index: 1, kind: input, shape index: {}]
  %s2 = inlined_call_operand.vmem [shape: bf16[4,64,512], index: 2, kind: output, shape index: {0}]
  %s3 = inlined_call_operand.vmem [shape: f32[4,4,1,64], index: 3, kind: output, shape index: {1}]
  %s4 = inlined_call_operand.vmem [shape: f32[4,4,1,64], index: 4, kind: output, shape index: {2}]
  %5 = xla_tuple %s2, %s3, %s4
  %s6 = sld [smem:[#allocation0]]
  $region94: #{dcgan_conv1d_forward.2} parent=0
    _
  %s8 = ssub.s32 1, %s6
  %s9 = scalar_select 0, %s8, %s6
  $region1: #{dcgan_conv1d_forward.2} parent=0
    #allocation3 [shape = 'u8[32768]{0}', space=vmem, size = 0x8000, scoped, tag = 'output window, operand 0']
    loop: start=0, step=1, limit=18
    $region2: #{dcgan_conv1d_forward.2} parent=1 // loop_pre_header
      _
    $region3: #{dcgan_conv1d_forward.2} parent=1 // loop_header
      %s11 = sphi 0, %s15
      %p12 = scmp.ge.s32.totalorder %s11, 18
      %s18 = sphi 0, %s30
      %s19 = sphi 0, %s26
      %s20 = sphi 0, %s18
      %s21 = sphi 0, %s19
      %s22 = sphi 0, %s20
      %s23 = sphi 0, %s21
      %s33 = sphi 0, %s35
      %s36 = sphi 0, %s33
      %s37 = sphi 0, %s36
      %s53 = sphi 0, %s37
      %s57 = sphi 0, %s57
      %s59 = sphi 0, %s57
      %s60 = sphi 0, %s59
      %s74 = sphi 0, %s60
      %s82 = sphi 0, %s84
      %s85 = sphi 0, %s82
      %s86 = sphi 0, %s85
      %s102 = sphi 0, %s86
      %s110 = sphi 0, %s112
      %s113 = sphi 0, %s110
      %s114 = sphi 0, %s113
      %s130 = sphi 0, %s114
      %s138 = sphi 0, %s140
      %s141 = sphi 0, %s138
      %s142 = sphi 0, %s141
      %s158 = sphi 0, %s142
    $region4: #{dcgan_conv1d_forward.2} parent=1 // loop_header_branch
      %14 = sbr.rel (%p12) target = $region8
    $region5: #{dcgan_conv1d_forward.2} parent=1 // loop_body
      %s16 = ssub.s32 %s11, 1
      %s17 = ssub.s32 %s11, 2
      %s24 = sadd.s32 1, %s19
      %p25 = scmp.ge.s32.totalorder %s24, 4
      %s26 = scalar_select %p25, 0, %s24
      %s27 = sadd.s32 1, %s18
      %s28 = scalar_select %p25, %s27, %s18
      %p29 = scmp.ge.s32.totalorder %s28, 4
      %s30 = scalar_select %p29, 0, %s28
      %s31 = ssub.s32 %s18, %s30
      %p32 = scmp.eq.s32.totalorder %s31, 0
      %s34 = sadd.s32 %s33, 1
      %s35 = scalar_select %p32, %s33, %s34
      %p38 = pneg %p32
      %p39 = scmp.eq.s32.totalorder %s11, 15
      %p40 = por %p38, %p39
      %p41 = scmp.ne.s32.totalorder %s33, %s36
      %p42 = scmp.eq.s32.totalorder %s11, 0
      %p43 = por %p41, %p42
      %p44 = scmp.ne.s32.totalorder %s33, %s36
      %p45 = scmp.eq.s32.totalorder %s16, 15
      %p46 = por %p44, %p45
      %p47 = scmp.ne.s32.totalorder %s36, %s37
      %p48 = scmp.eq.s32.totalorder %s16, 0
      %p49 = por %p47, %p48
      %p50 = scmp.ne.s32.totalorder %s36, %s37
      %p51 = scmp.eq.s32.totalorder %s17, 15
      %p52 = por %p50, %p51
      %p54 = scmp.ne.s32.totalorder %s37, %s53
      %p55 = scmp.eq.s32.totalorder %s17, 0
      %p56 = por %p54, %p55
      %s58 = sadd.s32 %s57, 1
      %p61 = scmp.eq.s32.totalorder %s11, 15
      %p62 = scmp.ne.s32.totalorder %s57, %s59
      %p63 = scmp.eq.s32.totalorder %s11, 0
      %p64 = por %p62, %p63
      %p65 = scmp.ne.s32.totalorder %s57, %s59
      %p66 = scmp.eq.s32.totalorder %s16, 15
      %p67 = por %p65, %p66
      %p68 = scmp.ne.s32.totalorder %s59, %s60
      %p69 = scmp.eq.s32.totalorder %s16, 0
      %p70 = por %p68, %p69
      %p71 = scmp.ne.s32.totalorder %s59, %s60
      %p72 = scmp.eq.s32.totalorder %s17, 15
      %p73 = por %p71, %p72
      %p75 = scmp.ne.s32.totalorder %s60, %s74
      %p76 = scmp.eq.s32.totalorder %s17, 0
      %p77 = por %p75, %p76
      %s78 = ssub.s32 %s18, %s30
      %s79 = ssub.s32 %s19, %s26
      %s80 = sor.u32 %s78, %s79
      %p81 = scmp.eq.s32.totalorder %s80, 0
      %s83 = sadd.s32 %s82, 1
      %s84 = scalar_select %p81, %s82, %s83
      %p87 = pneg %p81
      %p88 = scmp.eq.s32.totalorder %s11, 15
      %p89 = por %p87, %p88
      %p90 = scmp.ne.s32.totalorder %s82, %s85
      %p91 = scmp.eq.s32.totalorder %s11, 0
      %p92 = por %p90, %p91
      %p93 = scmp.ne.s32.totalorder %s82, %s85
      %p94 = scmp.eq.s32.totalorder %s16, 15
      %p95 = por %p93, %p94
      %p96 = scmp.ne.s32.totalorder %s85, %s86
      %p97 = scmp.eq.s32.totalorder %s16, 0
      %p98 = por %p96, %p97
      %p99 = scmp.ne.s32.totalorder %s85, %s86
      %p100 = scmp.eq.s32.totalorder %s17, 15
      %p101 = por %p99, %p100
      %p103 = scmp.ne.s32.totalorder %s86, %s102
      %p104 = scmp.eq.s32.totalorder %s17, 0
      %p105 = por %p103, %p104
      %s106 = ssub.s32 %s18, %s30
      %s107 = ssub.s32 %s19, %s26
      %s108 = sor.u32 %s106, %s107
      %p109 = scmp.eq.s32.totalorder %s108, 0
      %s111 = sadd.s32 %s110, 1
      %s112 = scalar_select %p109, %s110, %s111
      %p115 = pneg %p109
      %p116 = scmp.eq.s32.totalorder %s11, 15
      %p117 = por %p115, %p116
      %p118 = scmp.ne.s32.totalorder %s110, %s113
      %p119 = scmp.eq.s32.totalorder %s11, 0
      %p120 = por %p118, %p119
      %p121 = scmp.ne.s32.totalorder %s110, %s113
      %p122 = scmp.eq.s32.totalorder %s16, 15
      %p123 = por %p121, %p122
      %p124 = scmp.ne.s32.totalorder %s113, %s114
      %p125 = scmp.eq.s32.totalorder %s16, 0
      %p126 = por %p124, %p125
      %p127 = scmp.ne.s32.totalorder %s113, %s114
      %p128 = scmp.eq.s32.totalorder %s17, 15
      %p129 = por %p127, %p128
      %p131 = scmp.ne.s32.totalorder %s114, %s130
      %p132 = scmp.eq.s32.totalorder %s17, 0
      %p133 = por %p131, %p132
      %s134 = ssub.s32 %s18, %s30
      %s135 = ssub.s32 %s19, %s26
      %s136 = sor.u32 %s134, %s135
      %p137 = scmp.eq.s32.totalorder %s136, 0
      %s139 = sadd.s32 %s138, 1
      %s140 = scalar_select %p137, %s138, %s139
      %p143 = pneg %p137
      %p144 = scmp.eq.s32.totalorder %s11, 15
      %p145 = por %p143, %p144
      %p146 = scmp.ne.s32.totalorder %s138, %s141
      %p147 = scmp.eq.s32.totalorder %s11, 0
      %p148 = por %p146, %p147
      %p149 = scmp.ne.s32.totalorder %s138, %s141
      %p150 = scmp.eq.s32.totalorder %s16, 15
      %p151 = por %p149, %p150
      %p152 = scmp.ne.s32.totalorder %s141, %s142
      %p153 = scmp.eq.s32.totalorder %s16, 0
      %p154 = por %p152, %p153
      %p155 = scmp.ne.s32.totalorder %s141, %s142
      %p156 = scmp.eq.s32.totalorder %s17, 15
      %p157 = por %p155, %p156
      %p159 = scmp.ne.s32.totalorder %s142, %s158
      %p160 = scmp.eq.s32.totalorder %s17, 0
      %p161 = por %p159, %p160
      %p162 = scmp.le.s32.totalorder 1, %s11
      %p163 = scmp.lt.s32.totalorder %s11, 17
      %p164 = pnand %p162, %p163
      %p165 = pneg %p164
      // Predicated region
      $region9: #{dcgan_conv1d_forward.2} parent=5 // pred_check
        _
      $region10: #{dcgan_conv1d_forward.2} parent=5 // pred_check_branch
        %167 = sbr.rel (%p164) target = $region12
      $region11: #{dcgan_conv1d_forward.2} parent=5 // pred_region
        %s168 = ssub.s32 %s11, 1
        // Predicated region
        $region13: #{dcgan_conv1d_forward.2} parent=11 // pred_check
          %p169 = pneg %p70
        $region14: #{dcgan_conv1d_forward.2} parent=11 // pred_check_branch
          %171 = sbr.rel (%p169) target = $region16
        $region15: #{dcgan_conv1d_forward.2} parent=11 // pred_region
          _
        $region16: #{dcgan_conv1d_forward.2} parent=11 // pred_fallthru
          _
      $region12: #{dcgan_conv1d_forward.2} parent=5 // pred_fallthru
        _
      %p172 = scmp.lt.s32.totalorder %s11, 16
      // Predicated region
      $region17: #{dcgan_conv1d_forward.2} parent=5 // pred_check
        %p173 = pneg %p172
      $region18: #{dcgan_conv1d_forward.2} parent=5 // pred_check_branch
        %175 = sbr.rel (%p173) target = $region20
      $region19: #{dcgan_conv1d_forward.2} parent=5 // pred_region
        // Predicated region
        $region21: #{dcgan_conv1d_forward.2} parent=19 // pred_check
          %p176 = pneg %p43
        $region22: #{dcgan_conv1d_forward.2} parent=19 // pred_check_branch
          %178 = sbr.rel (%p176) target = $region24
        $region23: #{dcgan_conv1d_forward.2} parent=19 // pred_region
          %p179 = scmp.lt.s32.totalorder %s18, 3
          %s180 = scalar_select %p179, %s18, 3
          %s181 = smul.addr %s180, 257
          %s182 = smul.addr %s181, 4
          %s183 = scalar_lea.vmem %s0, %s182
        $region24: #{dcgan_conv1d_forward.2} parent=19 // pred_fallthru
          _
      $region20: #{dcgan_conv1d_forward.2} parent=5 // pred_fallthru
        _
      %p184 = scmp.le.s32.totalorder 1, %s11
      %p185 = scmp.lt.s32.totalorder %s11, 17
      %p186 = pnand %p184, %p185
      %p187 = pneg %p186
      // Predicated region
      $region25: #{dcgan_conv1d_forward.2} parent=5 // pred_check
        _
      $region26: #{dcgan_conv1d_forward.2} parent=5 // pred_check_branch
        %189 = sbr.rel (%p186) target = $region28
      $region27: #{dcgan_conv1d_forward.2} parent=5 // pred_region
        %s190 = ssub.s32 %s11, 1
        %p191 = scmp.lt.s32.totalorder %s20, 3
        %s192 = scalar_select %p191, %s20, 3
        %s193 = smul.addr %s192, 257
        %s194 = smul.addr %s193, 4
        %s195 = scalar_lea.vmem %s0, %s194
        %p196 = pneg %p49
        %p197 = pneg %p46
        %p198 = pneg %p70
        %p199 = pneg %p67
        %p200 = pneg %p98
        %p201 = pneg %p95
        %s202 = sand.u32 %s85, 1
        %s203 = sand.u32 %s85, 1
        %s204 = smul.addr %s203, 32
        %s205 = scalar_lea.vmem [#allocation3], %s204
        %p206 = pneg %p126
        %p207 = pneg %p123
        %p208 = scmp.lt.s32.totalorder %s20, 3
        %s209 = scalar_select %p208, %s20, 3
        %p210 = scmp.lt.s32.totalorder %s21, 3
        %s211 = scalar_select %p210, %s21, 3
        %s212 = smul.addr %s209, 4
        %s213 = sadd.s32 %s211, %s212
        %s214 = scalar_lea.vmem %s3, %s213
        %p215 = pneg %p154
        %p216 = pneg %p151
        %p217 = scmp.lt.s32.totalorder %s20, 3
        %s218 = scalar_select %p217, %s20, 3
        %p219 = scmp.lt.s32.totalorder %s21, 3
        %s220 = scalar_select %p219, %s21, 3
        %s221 = smul.addr %s218, 4
        %s222 = sadd.s32 %s220, %s221
        %s223 = scalar_lea.vmem %s4, %s222
        %p224 = scmp.lt.s32.totalorder %s20, 3
        %s225 = scalar_select %p224, %s20, 3
        %s226 = smul.addr %s225, 257
        %s227 = smul.addr %s226, 4
        %s228 = scalar_lea.vmem %s0, %s227
        %p229 = scmp.lt.s32.totalorder %s20, 3
        %s230 = scalar_select %p229, %s20, 3
        %p231 = scmp.lt.s32.totalorder %s21, 3
        %s232 = scalar_select %p231, %s21, 3
        %s233 = smul.addr %s230, 4
        %s234 = sadd.s32 %s232, %s233
        %s235 = scalar_lea.vmem %s3, %s234
        %p236 = scmp.lt.s32.totalorder %s20, 3
        %s237 = scalar_select %p236, %s20, 3
        %p238 = scmp.lt.s32.totalorder %s21, 3
        %s239 = scalar_select %p238, %s21, 3
        %s240 = smul.addr %s237, 4
        %s241 = sadd.s32 %s239, %s240
        %s242 = scalar_lea.vmem %s4, %s241
        %s244 = smul.u32 %s21, 512
        %s245 = sshra.s32 %s244, 3
        %s246 = sand.u32 %s244, 7
        %s247 = smul.addr %s245, 4
        %s248 = scalar_lea.vmem %s228, %s247
        %v249 = vld [vmem:[%s248] sm:$0xf]
        %v250 = vld [vmem:[%s248 + $0x4] sm:$0xf]
        %v251 = vld [vmem:[%s248 + $0x8] sm:$0xf]
        %v252 = vld [vmem:[%s248 + $0xc] sm:$0xf]
        %v253 = vld [vmem:[%s248 + $0x10] sm:$0xf]
        %v254 = vld [vmem:[%s248 + $0x14] sm:$0xf]
        %v255 = vld [vmem:[%s248 + $0x18] sm:$0xf]
        %v256 = vld [vmem:[%s248 + $0x1c] sm:$0xf]
        %v257 = vld [vmem:[%s248 + $0x20] sm:$0xf]
        %v258 = vld [vmem:[%s248 + $0x24] sm:$0xf]
        %v259 = vld [vmem:[%s248 + $0x28] sm:$0xf]
        %v260 = vld [vmem:[%s248 + $0x2c] sm:$0xf]
        %v261 = vld [vmem:[%s248 + $0x30] sm:$0xf]
        %v262 = vld [vmem:[%s248 + $0x34] sm:$0xf]
        %v263 = vld [vmem:[%s248 + $0x38] sm:$0xf]
        %v264 = vld [vmem:[%s248 + $0x3c] sm:$0xf]
        %v265 = vld [vmem:[%s248 + $0x40] sm:$0xf]
        %v266 = vld [vmem:[%s248 + $0x44] sm:$0xf]
        %v267 = vld [vmem:[%s248 + $0x48] sm:$0xf]
        %v268 = vld [vmem:[%s248 + $0x4c] sm:$0xf]
        %v269 = vld [vmem:[%s248 + $0x50] sm:$0xf]
        %v270 = vld [vmem:[%s248 + $0x54] sm:$0xf]
        %v271 = vld [vmem:[%s248 + $0x58] sm:$0xf]
        %v272 = vld [vmem:[%s248 + $0x5c] sm:$0xf]
        %v273 = vld [vmem:[%s248 + $0x60] sm:$0xf]
        %v274 = vld [vmem:[%s248 + $0x64] sm:$0xf]
        %v275 = vld [vmem:[%s248 + $0x68] sm:$0xf]
        %v276 = vld [vmem:[%s248 + $0x6c] sm:$0xf]
        %v277 = vld [vmem:[%s248 + $0x70] sm:$0xf]
        %v278 = vld [vmem:[%s248 + $0x74] sm:$0xf]
        %v279 = vld [vmem:[%s248 + $0x78] sm:$0xf]
        %v280 = vld [vmem:[%s248 + $0x7c] sm:$0xf]
        %v281 = vld [vmem:[%s248 + $0x80] sm:$0xf]
        %v282 = vld [vmem:[%s248 + $0x84] sm:$0xf]
        %v283 = vld [vmem:[%s248 + $0x88] sm:$0xf]
        %v284 = vld [vmem:[%s248 + $0x8c] sm:$0xf]
        %v285 = vld [vmem:[%s248 + $0x90] sm:$0xf]
        %v286 = vld [vmem:[%s248 + $0x94] sm:$0xf]
        %v287 = vld [vmem:[%s248 + $0x98] sm:$0xf]
        %v288 = vld [vmem:[%s248 + $0x9c] sm:$0xf]
        %v289 = vld [vmem:[%s248 + $0xa0] sm:$0xf]
        %v290 = vld [vmem:[%s248 + $0xa4] sm:$0xf]
        %v291 = vld [vmem:[%s248 + $0xa8] sm:$0xf]
        %v292 = vld [vmem:[%s248 + $0xac] sm:$0xf]
        %v293 = vld [vmem:[%s248 + $0xb0] sm:$0xf]
        %v294 = vld [vmem:[%s248 + $0xb4] sm:$0xf]
        %v295 = vld [vmem:[%s248 + $0xb8] sm:$0xf]
        %v296 = vld [vmem:[%s248 + $0xbc] sm:$0xf]
        %v297 = vld [vmem:[%s248 + $0xc0] sm:$0xf]
        %v298 = vld [vmem:[%s248 + $0xc4] sm:$0xf]
        %v299 = vld [vmem:[%s248 + $0xc8] sm:$0xf]
        %v300 = vld [vmem:[%s248 + $0xcc] sm:$0xf]
        %v301 = vld [vmem:[%s248 + $0xd0] sm:$0xf]
        %v302 = vld [vmem:[%s248 + $0xd4] sm:$0xf]
        %v303 = vld [vmem:[%s248 + $0xd8] sm:$0xf]
        %v304 = vld [vmem:[%s248 + $0xdc] sm:$0xf]
        %v305 = vld [vmem:[%s248 + $0xe0] sm:$0xf]
        %v306 = vld [vmem:[%s248 + $0xe4] sm:$0xf]
        %v307 = vld [vmem:[%s248 + $0xe8] sm:$0xf]
        %v308 = vld [vmem:[%s248 + $0xec] sm:$0xf]
        %v309 = vld [vmem:[%s248 + $0xf0] sm:$0xf]
        %v310 = vld [vmem:[%s248 + $0xf4] sm:$0xf]
        %v311 = vld [vmem:[%s248 + $0xf8] sm:$0xf]
        %v312 = vld [vmem:[%s248 + $0xfc] sm:$0xf]
        %v313 = vld [vmem:[%s248 + $0x100] sm:$0x3]
        %v378 = vunpack.c.l.b16 %v249
        %v379 = vunpack.c.l.b16 %v250
        %v380 = vunpack.c.l.b16 %v251
        %v381 = vunpack.c.l.b16 %v252
        %v382 = vunpack.c.l.b16 %v253
        %v383 = vunpack.c.l.b16 %v254
        %v384 = vunpack.c.l.b16 %v255
        %v385 = vunpack.c.l.b16 %v256
        %v386 = vunpack.c.l.b16 %v257
        %v387 = vunpack.c.l.b16 %v258
        %v388 = vunpack.c.l.b16 %v259
        %v389 = vunpack.c.l.b16 %v260
        %v390 = vunpack.c.l.b16 %v261
        %v391 = vunpack.c.l.b16 %v262
        %v392 = vunpack.c.l.b16 %v263
        %v393 = vunpack.c.l.b16 %v264
        %v394 = vunpack.c.l.b16 %v265
        %v395 = vunpack.c.l.b16 %v266
        %v396 = vunpack.c.l.b16 %v267
        %v397 = vunpack.c.l.b16 %v268
        %v398 = vunpack.c.l.b16 %v269
        %v399 = vunpack.c.l.b16 %v270
        %v400 = vunpack.c.l.b16 %v271
        %v401 = vunpack.c.l.b16 %v272
        %v402 = vunpack.c.l.b16 %v273
        %v403 = vunpack.c.l.b16 %v274
        %v404 = vunpack.c.l.b16 %v275
        %v405 = vunpack.c.l.b16 %v276
        %v406 = vunpack.c.l.b16 %v277
        %v407 = vunpack.c.l.b16 %v278
        %v408 = vunpack.c.l.b16 %v279
        %v409 = vunpack.c.l.b16 %v280
        %v410 = vunpack.c.l.b16 %v281
        %v411 = vunpack.c.l.b16 %v282
        %v412 = vunpack.c.l.b16 %v283
        %v413 = vunpack.c.l.b16 %v284
        %v414 = vunpack.c.l.b16 %v285
        %v415 = vunpack.c.l.b16 %v286
        %v416 = vunpack.c.l.b16 %v287
        %v417 = vunpack.c.l.b16 %v288
        %v418 = vunpack.c.l.b16 %v289
        %v419 = vunpack.c.l.b16 %v290
        %v420 = vunpack.c.l.b16 %v291
        %v421 = vunpack.c.l.b16 %v292
        %v422 = vunpack.c.l.b16 %v293
        %v423 = vunpack.c.l.b16 %v294
        %v424 = vunpack.c.l.b16 %v295
        %v425 = vunpack.c.l.b16 %v296
        %v426 = vunpack.c.l.b16 %v297
        %v427 = vunpack.c.l.b16 %v298
        %v428 = vunpack.c.l.b16 %v299
        %v429 = vunpack.c.l.b16 %v300
        %v430 = vunpack.c.l.b16 %v301
        %v431 = vunpack.c.l.b16 %v302
        %v432 = vunpack.c.l.b16 %v303
        %v433 = vunpack.c.l.b16 %v304
        %v434 = vunpack.c.l.b16 %v305
        %v435 = vunpack.c.l.b16 %v306
        %v436 = vunpack.c.l.b16 %v307
        %v437 = vunpack.c.l.b16 %v308
        %v438 = vunpack.c.l.b16 %v309
        %v439 = vunpack.c.l.b16 %v310
        %v440 = vunpack.c.l.b16 %v311
        %v441 = vunpack.c.l.b16 %v312
        %v442 = vpack.c.b16 %v379, %v378
        %v443 = vpack.c.b16 %v381, %v380
        %v444 = vpack.c.b16 %v383, %v382
        %v445 = vpack.c.b16 %v385, %v384
        %v446 = vpack.c.b16 %v387, %v386
        %v447 = vpack.c.b16 %v389, %v388
        %v448 = vpack.c.b16 %v391, %v390
        %v449 = vpack.c.b16 %v393, %v392
        %v450 = vpack.c.b16 %v395, %v394
        %v451 = vpack.c.b16 %v397, %v396
        %v452 = vpack.c.b16 %v399, %v398
        %v453 = vpack.c.b16 %v401, %v400
        %v454 = vpack.c.b16 %v403, %v402
        %v455 = vpack.c.b16 %v405, %v404
        %v456 = vpack.c.b16 %v407, %v406
        %v457 = vpack.c.b16 %v409, %v408
        %v458 = vpack.c.b16 %v411, %v410
        %v459 = vpack.c.b16 %v413, %v412
        %v460 = vpack.c.b16 %v415, %v414
        %v461 = vpack.c.b16 %v417, %v416
        %v462 = vpack.c.b16 %v419, %v418
        %v463 = vpack.c.b16 %v421, %v420
        %v464 = vpack.c.b16 %v423, %v422
        %v465 = vpack.c.b16 %v425, %v424
        %v466 = vpack.c.b16 %v427, %v426
        %v467 = vpack.c.b16 %v429, %v428
        %v468 = vpack.c.b16 %v431, %v430
        %v469 = vpack.c.b16 %v433, %v432
        %v470 = vpack.c.b16 %v435, %v434
        %v471 = vpack.c.b16 %v437, %v436
        %v472 = vpack.c.b16 %v439, %v438
        %v473 = vpack.c.b16 %v441, %v440
        %v475 = vunpack.c.l.b16 %v313
        %v476 = vpack.c.b16 %v475, %v475
        %vm477 = vsmask.f32 7424
        %v479 = vshrl.u32 %v442, 16
        %v481 = vshll.u32 %v442, 16
        %v483 = vrot.slane %v481, 1
        %v484 = vor.u32 %v479, %v483
        %v486 = vshll.u32 %v443, 16
        %v488 = vrot.slane %v486, 1
        %v489 = vsel %vm477, %v484, %v488
        %v490 = vshrl.u32 %v443, 16
        %v492 = vor.u32 %v490, %v488
        %v494 = vshll.u32 %v444, 16
        %v496 = vrot.slane %v494, 1
        %v497 = vsel %vm477, %v492, %v496
        %v498 = vshrl.u32 %v444, 16
        %v500 = vor.u32 %v498, %v496
        %v502 = vshll.u32 %v445, 16
        %v504 = vrot.slane %v502, 1
        %v505 = vsel %vm477, %v500, %v504
        %v506 = vshrl.u32 %v445, 16
        %v508 = vor.u32 %v506, %v504
        %v510 = vshll.u32 %v446, 16
        %v512 = vrot.slane %v510, 1
        %v513 = vsel %vm477, %v508, %v512
        %v514 = vshrl.u32 %v446, 16
        %v516 = vor.u32 %v514, %v512
        %v518 = vshll.u32 %v447, 16
        %v520 = vrot.slane %v518, 1
        %v521 = vsel %vm477, %v516, %v520
        %v522 = vshrl.u32 %v447, 16
        %v524 = vor.u32 %v522, %v520
        %v526 = vshll.u32 %v448, 16
        %v528 = vrot.slane %v526, 1
        %v529 = vsel %vm477, %v524, %v528
        %v530 = vshrl.u32 %v448, 16
        %v532 = vor.u32 %v530, %v528
        %v534 = vshll.u32 %v449, 16
        %v536 = vrot.slane %v534, 1
        %v537 = vsel %vm477, %v532, %v536
        %v538 = vshrl.u32 %v449, 16
        %v540 = vor.u32 %v538, %v536
        %v542 = vshll.u32 %v450, 16
        %v544 = vrot.slane %v542, 1
        %v545 = vsel %vm477, %v540, %v544
        %v546 = vshrl.u32 %v450, 16
        %v548 = vor.u32 %v546, %v544
        %v550 = vshll.u32 %v451, 16
        %v552 = vrot.slane %v550, 1
        %v553 = vsel %vm477, %v548, %v552
        %v554 = vshrl.u32 %v451, 16
        %v556 = vor.u32 %v554, %v552
        %v558 = vshll.u32 %v452, 16
        %v560 = vrot.slane %v558, 1
        %v561 = vsel %vm477, %v556, %v560
        %v562 = vshrl.u32 %v452, 16
        %v564 = vor.u32 %v562, %v560
        %v566 = vshll.u32 %v453, 16
        %v568 = vrot.slane %v566, 1
        %v569 = vsel %vm477, %v564, %v568
        %v570 = vshrl.u32 %v453, 16
        %v572 = vor.u32 %v570, %v568
        %v574 = vshll.u32 %v454, 16
        %v576 = vrot.slane %v574, 1
        %v577 = vsel %vm477, %v572, %v576
        %v578 = vshrl.u32 %v454, 16
        %v580 = vor.u32 %v578, %v576
        %v582 = vshll.u32 %v455, 16
        %v584 = vrot.slane %v582, 1
        %v585 = vsel %vm477, %v580, %v584
        %v586 = vshrl.u32 %v455, 16
        %v588 = vor.u32 %v586, %v584
        %v590 = vshll.u32 %v456, 16
        %v592 = vrot.slane %v590, 1
        %v593 = vsel %vm477, %v588, %v592
        %v594 = vshrl.u32 %v456, 16
        %v596 = vor.u32 %v594, %v592
        %v598 = vshll.u32 %v457, 16
        %v600 = vrot.slane %v598, 1
        %v601 = vsel %vm477, %v596, %v600
        %v602 = vshrl.u32 %v457, 16
        %v604 = vor.u32 %v602, %v600
        %v606 = vshll.u32 %v458, 16
        %v608 = vrot.slane %v606, 1
        %v609 = vsel %vm477, %v604, %v608
        %v610 = vshrl.u32 %v458, 16
        %v612 = vor.u32 %v610, %v608
        %v614 = vshll.u32 %v459, 16
        %v616 = vrot.slane %v614, 1
        %v617 = vsel %vm477, %v612, %v616
        %v618 = vshrl.u32 %v459, 16
        %v620 = vor.u32 %v618, %v616
        %v622 = vshll.u32 %v460, 16
        %v624 = vrot.slane %v622, 1
        %v625 = vsel %vm477, %v620, %v624
        %v626 = vshrl.u32 %v460, 16
        %v628 = vor.u32 %v626, %v624
        %v630 = vshll.u32 %v461, 16
        %v632 = vrot.slane %v630, 1
        %v633 = vsel %vm477, %v628, %v632
        %v634 = vshrl.u32 %v461, 16
        %v636 = vor.u32 %v634, %v632
        %v638 = vshll.u32 %v462, 16
        %v640 = vrot.slane %v638, 1
        %v641 = vsel %vm477, %v636, %v640
        %v642 = vshrl.u32 %v462, 16
        %v644 = vor.u32 %v642, %v640
        %v646 = vshll.u32 %v463, 16
        %v648 = vrot.slane %v646, 1
        %v649 = vsel %vm477, %v644, %v648
        %v650 = vshrl.u32 %v463, 16
        %v652 = vor.u32 %v650, %v648
        %v654 = vshll.u32 %v464, 16
        %v656 = vrot.slane %v654, 1
        %v657 = vsel %vm477, %v652, %v656
        %v658 = vshrl.u32 %v464, 16
        %v660 = vor.u32 %v658, %v656
        %v662 = vshll.u32 %v465, 16
        %v664 = vrot.slane %v662, 1
        %v665 = vsel %vm477, %v660, %v664
        %v666 = vshrl.u32 %v465, 16
        %v668 = vor.u32 %v666, %v664
        %v670 = vshll.u32 %v466, 16
        %v672 = vrot.slane %v670, 1
        %v673 = vsel %vm477, %v668, %v672
        %v674 = vshrl.u32 %v466, 16
        %v676 = vor.u32 %v674, %v672
        %v678 = vshll.u32 %v467, 16
        %v680 = vrot.slane %v678, 1
        %v681 = vsel %vm477, %v676, %v680
        %v682 = vshrl.u32 %v467, 16
        %v684 = vor.u32 %v682, %v680
        %v686 = vshll.u32 %v468, 16
        %v688 = vrot.slane %v686, 1
        %v689 = vsel %vm477, %v684, %v688
        %v690 = vshrl.u32 %v468, 16
        %v692 = vor.u32 %v690, %v688
        %v694 = vshll.u32 %v469, 16
        %v696 = vrot.slane %v694, 1
        %v697 = vsel %vm477, %v692, %v696
        %v698 = vshrl.u32 %v469, 16
        %v700 = vor.u32 %v698, %v696
        %v702 = vshll.u32 %v470, 16
        %v704 = vrot.slane %v702, 1
        %v705 = vsel %vm477, %v700, %v704
        %v706 = vshrl.u32 %v470, 16
        %v708 = vor.u32 %v706, %v704
        %v710 = vshll.u32 %v471, 16
        %v712 = vrot.slane %v710, 1
        %v713 = vsel %vm477, %v708, %v712
        %v714 = vshrl.u32 %v471, 16
        %v716 = vor.u32 %v714, %v712
        %v718 = vshll.u32 %v472, 16
        %v720 = vrot.slane %v718, 1
        %v721 = vsel %vm477, %v716, %v720
        %v722 = vshrl.u32 %v472, 16
        %v724 = vor.u32 %v722, %v720
        %v726 = vshll.u32 %v473, 16
        %v728 = vrot.slane %v726, 1
        %v729 = vsel %vm477, %v724, %v728
        %v730 = vshrl.u32 %v473, 16
        %v732 = vor.u32 %v730, %v728
        %v734 = vshll.u32 %v476, 16
        %v736 = vrot.slane %v734, 1
        %v737 = vsel %vm477, %v732, %v736
        %738 = vrot.lane.b32.xlu0 %v489, 64
        %v739 = vpop.permute.xlu0 %738
        %740 = vrot.lane.b32.xlu0 %v497, 64
        %v741 = vpop.permute.xlu0 %740
        %742 = vrot.lane.b32.xlu0 %v505, 64
        %v743 = vpop.permute.xlu0 %742
        %744 = vrot.lane.b32.xlu0 %v513, 64
        %v745 = vpop.permute.xlu0 %744
        %746 = vrot.lane.b32.xlu0 %v521, 64
        %v747 = vpop.permute.xlu0 %746
        %748 = vrot.lane.b32.xlu0 %v529, 64
        %v749 = vpop.permute.xlu0 %748
        %750 = vrot.lane.b32.xlu0 %v537, 64
        %v751 = vpop.permute.xlu0 %750
        %752 = vrot.lane.b32.xlu0 %v545, 64
        %v753 = vpop.permute.xlu0 %752
        %754 = vrot.lane.b32.xlu0 %v553, 64
        %v755 = vpop.permute.xlu0 %754
        %756 = vrot.lane.b32.xlu0 %v561, 64
        %v757 = vpop.permute.xlu0 %756
        %758 = vrot.lane.b32.xlu0 %v569, 64
        %v759 = vpop.permute.xlu0 %758
        %760 = vrot.lane.b32.xlu0 %v577, 64
        %v761 = vpop.permute.xlu0 %760
        %762 = vrot.lane.b32.xlu0 %v585, 64
        %v763 = vpop.permute.xlu0 %762
        %764 = vrot.lane.b32.xlu0 %v593, 64
        %v765 = vpop.permute.xlu0 %764
        %766 = vrot.lane.b32.xlu0 %v601, 64
        %v767 = vpop.permute.xlu0 %766
        %768 = vrot.lane.b32.xlu0 %v609, 64
        %v769 = vpop.permute.xlu0 %768
        %770 = vrot.lane.b32.xlu0 %v617, 64
        %v771 = vpop.permute.xlu0 %770
        %772 = vrot.lane.b32.xlu0 %v625, 64
        %v773 = vpop.permute.xlu0 %772
        %774 = vrot.lane.b32.xlu0 %v633, 64
        %v775 = vpop.permute.xlu0 %774
        %776 = vrot.lane.b32.xlu0 %v641, 64
        %v777 = vpop.permute.xlu0 %776
        %778 = vrot.lane.b32.xlu0 %v649, 64
        %v779 = vpop.permute.xlu0 %778
        %780 = vrot.lane.b32.xlu0 %v657, 64
        %v781 = vpop.permute.xlu0 %780
        %782 = vrot.lane.b32.xlu0 %v665, 64
        %v783 = vpop.permute.xlu0 %782
        %784 = vrot.lane.b32.xlu0 %v673, 64
        %v785 = vpop.permute.xlu0 %784
        %786 = vrot.lane.b32.xlu0 %v681, 64
        %v787 = vpop.permute.xlu0 %786
        %788 = vrot.lane.b32.xlu0 %v689, 64
        %v789 = vpop.permute.xlu0 %788
        %790 = vrot.lane.b32.xlu0 %v697, 64
        %v791 = vpop.permute.xlu0 %790
        %792 = vrot.lane.b32.xlu0 %v705, 64
        %v793 = vpop.permute.xlu0 %792
        %794 = vrot.lane.b32.xlu0 %v713, 64
        %v795 = vpop.permute.xlu0 %794
        %796 = vrot.lane.b32.xlu0 %v721, 64
        %v797 = vpop.permute.xlu0 %796
        %798 = vrot.lane.b32.xlu0 %v729, 64
        %v799 = vpop.permute.xlu0 %798
        %800 = vrot.lane.b32.xlu0 %v737, 64
        %v801 = vpop.permute.xlu0 %800
        %vm802 = vcmask 1046528
        %v803 = vrot.slane %v442, 1
        %v804 = vrot.slane %v443, 1
        %v805 = vsel %vm802, %v803, %v804
        %v806 = vrot.slane %v444, 1
        %v807 = vsel %vm802, %v804, %v806
        %v808 = vrot.slane %v445, 1
        %v809 = vsel %vm802, %v806, %v808
        %v810 = vrot.slane %v446, 1
        %v811 = vsel %vm802, %v808, %v810
        %v812 = vrot.slane %v447, 1
        %v813 = vsel %vm802, %v810, %v812
        %v814 = vrot.slane %v448, 1
        %v815 = vsel %vm802, %v812, %v814
        %v816 = vrot.slane %v449, 1
        %v817 = vsel %vm802, %v814, %v816
        %v818 = vrot.slane %v450, 1
        %v819 = vsel %vm802, %v816, %v818
        %v820 = vrot.slane %v451, 1
        %v821 = vsel %vm802, %v818, %v820
        %v822 = vrot.slane %v452, 1
        %v823 = vsel %vm802, %v820, %v822
        %v824 = vrot.slane %v453, 1
        %v825 = vsel %vm802, %v822, %v824
        %v826 = vrot.slane %v454, 1
        %v827 = vsel %vm802, %v824, %v826
        %v828 = vrot.slane %v455, 1
        %v829 = vsel %vm802, %v826, %v828
        %v830 = vrot.slane %v456, 1
        %v831 = vsel %vm802, %v828, %v830
        %v832 = vrot.slane %v457, 1
        %v833 = vsel %vm802, %v830, %v832
        %v834 = vrot.slane %v458, 1
        %v835 = vsel %vm802, %v832, %v834
        %v836 = vrot.slane %v459, 1
        %v837 = vsel %vm802, %v834, %v836
        %v838 = vrot.slane %v460, 1
        %v839 = vsel %vm802, %v836, %v838
        %v840 = vrot.slane %v461, 1
        %v841 = vsel %vm802, %v838, %v840
        %v842 = vrot.slane %v462, 1
        %v843 = vsel %vm802, %v840, %v842
        %v844 = vrot.slane %v463, 1
        %v845 = vsel %vm802, %v842, %v844
        %v846 = vrot.slane %v464, 1
        %v847 = vsel %vm802, %v844, %v846
        %v848 = vrot.slane %v465, 1
        %v849 = vsel %vm802, %v846, %v848
        %v850 = vrot.slane %v466, 1
        %v851 = vsel %vm802, %v848, %v850
        %v852 = vrot.slane %v467, 1
        %v853 = vsel %vm802, %v850, %v852
        %v854 = vrot.slane %v468, 1
        %v855 = vsel %vm802, %v852, %v854
        %v856 = vrot.slane %v469, 1
        %v857 = vsel %vm802, %v854, %v856
        %v858 = vrot.slane %v470, 1
        %v859 = vsel %vm802, %v856, %v858
        %v860 = vrot.slane %v471, 1
        %v861 = vsel %vm802, %v858, %v860
        %v862 = vrot.slane %v472, 1
        %v863 = vsel %vm802, %v860, %v862
        %v864 = vrot.slane %v473, 1
        %v865 = vsel %vm802, %v862, %v864
        %v866 = vrot.slane %v476, 1
        %v867 = vsel %vm802, %v864, %v866
        %vm868 = vsmask.f32 6400
        %v869 = vrot.slane %v479, 1
        %v870 = vrot.slane %v481, 2
        %v871 = vor.u32 %v869, %v870
        %v872 = vrot.slane %v490, 1
        %v873 = vrot.slane %v486, 2
        %v874 = vor.u32 %v872, %v873
        %v875 = vsel %vm868, %v871, %v874
        %v876 = vrot.slane %v498, 1
        %v877 = vrot.slane %v494, 2
        %v878 = vor.u32 %v876, %v877
        %v879 = vsel %vm868, %v874, %v878
        %v880 = vrot.slane %v506, 1
        %v881 = vrot.slane %v502, 2
        %v882 = vor.u32 %v880, %v881
        %v883 = vsel %vm868, %v878, %v882
        %v884 = vrot.slane %v514, 1
        %v885 = vrot.slane %v510, 2
        %v886 = vor.u32 %v884, %v885
        %v887 = vsel %vm868, %v882, %v886
        %v888 = vrot.slane %v522, 1
        %v889 = vrot.slane %v518, 2
        %v890 = vor.u32 %v888, %v889
        %v891 = vsel %vm868, %v886, %v890
        %v892 = vrot.slane %v530, 1
        %v893 = vrot.slane %v526, 2
        %v894 = vor.u32 %v892, %v893
        %v895 = vsel %vm868, %v890, %v894
        %v896 = vrot.slane %v538, 1
        %v897 = vrot.slane %v534, 2
        %v898 = vor.u32 %v896, %v897
        %v899 = vsel %vm868, %v894, %v898
        %v900 = vrot.slane %v546, 1
        %v901 = vrot.slane %v542, 2
        %v902 = vor.u32 %v900, %v901
        %v903 = vsel %vm868, %v898, %v902
        %v904 = vrot.slane %v554, 1
        %v905 = vrot.slane %v550, 2
        %v906 = vor.u32 %v904, %v905
        %v907 = vsel %vm868, %v902, %v906
        %v908 = vrot.slane %v562, 1
        %v909 = vrot.slane %v558, 2
        %v910 = vor.u32 %v908, %v909
        %v911 = vsel %vm868, %v906, %v910
        %v912 = vrot.slane %v570, 1
        %v913 = vrot.slane %v566, 2
        %v914 = vor.u32 %v912, %v913
        %v915 = vsel %vm868, %v910, %v914
        %v916 = vrot.slane %v578, 1
        %v917 = vrot.slane %v574, 2
        %v918 = vor.u32 %v916, %v917
        %v919 = vsel %vm868, %v914, %v918
        %v920 = vrot.slane %v586, 1
        %v921 = vrot.slane %v582, 2
        %v922 = vor.u32 %v920, %v921
        %v923 = vsel %vm868, %v918, %v922
        %v924 = vrot.slane %v594, 1
        %v925 = vrot.slane %v590, 2
        %v926 = vor.u32 %v924, %v925
        %v927 = vsel %vm868, %v922, %v926
        %v928 = vrot.slane %v602, 1
        %v929 = vrot.slane %v598, 2
        %v930 = vor.u32 %v928, %v929
        %v931 = vsel %vm868, %v926, %v930
        %v932 = vrot.slane %v610, 1
        %v933 = vrot.slane %v606, 2
        %v934 = vor.u32 %v932, %v933
        %v935 = vsel %vm868, %v930, %v934
        %v936 = vrot.slane %v618, 1
        %v937 = vrot.slane %v614, 2
        %v938 = vor.u32 %v936, %v937
        %v939 = vsel %vm868, %v934, %v938
        %v940 = vrot.slane %v626, 1
        %v941 = vrot.slane %v622, 2
        %v942 = vor.u32 %v940, %v941
        %v943 = vsel %vm868, %v938, %v942
        %v944 = vrot.slane %v634, 1
        %v945 = vrot.slane %v630, 2
        %v946 = vor.u32 %v944, %v945
        %v947 = vsel %vm868, %v942, %v946
        %v948 = vrot.slane %v642, 1
        %v949 = vrot.slane %v638, 2
        %v950 = vor.u32 %v948, %v949
        %v951 = vsel %vm868, %v946, %v950
        %v952 = vrot.slane %v650, 1
        %v953 = vrot.slane %v646, 2
        %v954 = vor.u32 %v952, %v953
        %v955 = vsel %vm868, %v950, %v954
        %v956 = vrot.slane %v658, 1
        %v957 = vrot.slane %v654, 2
        %v958 = vor.u32 %v956, %v957
        %v959 = vsel %vm868, %v954, %v958
        %v960 = vrot.slane %v666, 1
        %v961 = vrot.slane %v662, 2
        %v962 = vor.u32 %v960, %v961
        %v963 = vsel %vm868, %v958, %v962
        %v964 = vrot.slane %v674, 1
        %v965 = vrot.slane %v670, 2
        %v966 = vor.u32 %v964, %v965
        %v967 = vsel %vm868, %v962, %v966
        %v968 = vrot.slane %v682, 1
        %v969 = vrot.slane %v678, 2
        %v970 = vor.u32 %v968, %v969
        %v971 = vsel %vm868, %v966, %v970
        %v972 = vrot.slane %v690, 1
        %v973 = vrot.slane %v686, 2
        %v974 = vor.u32 %v972, %v973
        %v975 = vsel %vm868, %v970, %v974
        %v976 = vrot.slane %v698, 1
        %v977 = vrot.slane %v694, 2
        %v978 = vor.u32 %v976, %v977
        %v979 = vsel %vm868, %v974, %v978
        %v980 = vrot.slane %v706, 1
        %v981 = vrot.slane %v702, 2
        %v982 = vor.u32 %v980, %v981
        %v983 = vsel %vm868, %v978, %v982
        %v984 = vrot.slane %v714, 1
        %v985 = vrot.slane %v710, 2
        %v986 = vor.u32 %v984, %v985
        %v987 = vsel %vm868, %v982, %v986
        %v988 = vrot.slane %v722, 1
        %v989 = vrot.slane %v718, 2
        %v990 = vor.u32 %v988, %v989
        %v991 = vsel %vm868, %v986, %v990
        %v992 = vrot.slane %v730, 1
        %v993 = vrot.slane %v726, 2
        %v994 = vor.u32 %v992, %v993
        %v995 = vsel %vm868, %v990, %v994
        %v996 = vshrl.u32 %v476, 16
        %v998 = vrot.slane %v996, 1
        %v999 = vrot.slane %v734, 2
        %v1000 = vor.u32 %v998, %v999
        %v1001 = vsel %vm868, %v994, %v1000
        %1002 = vrot.lane.b32.xlu0 %v875, 64
        %v1003 = vpop.permute.xlu0 %1002
        %1004 = vrot.lane.b32.xlu0 %v879, 64
        %v1005 = vpop.permute.xlu0 %1004
        %1006 = vrot.lane.b32.xlu0 %v883, 64
        %v1007 = vpop.permute.xlu0 %1006
        %1008 = vrot.lane.b32.xlu0 %v887, 64
        %v1009 = vpop.permute.xlu0 %1008
        %1010 = vrot.lane.b32.xlu0 %v891, 64
        %v1011 = vpop.permute.xlu0 %1010
        %1012 = vrot.lane.b32.xlu0 %v895, 64
        %v1013 = vpop.permute.xlu0 %1012
        %1014 = vrot.lane.b32.xlu0 %v899, 64
        %v1015 = vpop.permute.xlu0 %1014
        %1016 = vrot.lane.b32.xlu0 %v903, 64
        %v1017 = vpop.permute.xlu0 %1016
        %1018 = vrot.lane.b32.xlu0 %v907, 64
        %v1019 = vpop.permute.xlu0 %1018
        %1020 = vrot.lane.b32.xlu0 %v911, 64
        %v1021 = vpop.permute.xlu0 %1020
        %1022 = vrot.lane.b32.xlu0 %v915, 64
        %v1023 = vpop.permute.xlu0 %1022
        %1024 = vrot.lane.b32.xlu0 %v919, 64
        %v1025 = vpop.permute.xlu0 %1024
        %1026 = vrot.lane.b32.xlu0 %v923, 64
        %v1027 = vpop.permute.xlu0 %1026
        %1028 = vrot.lane.b32.xlu0 %v927, 64
        %v1029 = vpop.permute.xlu0 %1028
        %1030 = vrot.lane.b32.xlu0 %v931, 64
        %v1031 = vpop.permute.xlu0 %1030
        %1032 = vrot.lane.b32.xlu0 %v935, 64
        %v1033 = vpop.permute.xlu0 %1032
        %1034 = vrot.lane.b32.xlu0 %v939, 64
        %v1035 = vpop.permute.xlu0 %1034
        %1036 = vrot.lane.b32.xlu0 %v943, 64
        %v1037 = vpop.permute.xlu0 %1036
        %1038 = vrot.lane.b32.xlu0 %v947, 64
        %v1039 = vpop.permute.xlu0 %1038
        %1040 = vrot.lane.b32.xlu0 %v951, 64
        %v1041 = vpop.permute.xlu0 %1040
        %1042 = vrot.lane.b32.xlu0 %v955, 64
        %v1043 = vpop.permute.xlu0 %1042
        %1044 = vrot.lane.b32.xlu0 %v959, 64
        %v1045 = vpop.permute.xlu0 %1044
        %1046 = vrot.lane.b32.xlu0 %v963, 64
        %v1047 = vpop.permute.xlu0 %1046
        %1048 = vrot.lane.b32.xlu0 %v967, 64
        %v1049 = vpop.permute.xlu0 %1048
        %1050 = vrot.lane.b32.xlu0 %v971, 64
        %v1051 = vpop.permute.xlu0 %1050
        %1052 = vrot.lane.b32.xlu0 %v975, 64
        %v1053 = vpop.permute.xlu0 %1052
        %1054 = vrot.lane.b32.xlu0 %v979, 64
        %v1055 = vpop.permute.xlu0 %1054
        %1056 = vrot.lane.b32.xlu0 %v983, 64
        %v1057 = vpop.permute.xlu0 %1056
        %1058 = vrot.lane.b32.xlu0 %v987, 64
        %v1059 = vpop.permute.xlu0 %1058
        %1060 = vrot.lane.b32.xlu0 %v991, 64
        %v1061 = vpop.permute.xlu0 %1060
        %1062 = vrot.lane.b32.xlu0 %v995, 64
        %v1063 = vpop.permute.xlu0 %1062
        %1064 = vrot.lane.b32.xlu0 %v1001, 64
        %v1065 = vpop.permute.xlu0 %1064
        %vm1066 = vcmask 1045504
        %v1067 = vrot.slane %v442, 2
        %v1068 = vrot.slane %v443, 2
        %v1069 = vsel %vm1066, %v1067, %v1068
        %v1070 = vrot.slane %v444, 2
        %v1071 = vsel %vm1066, %v1068, %v1070
        %v1072 = vrot.slane %v445, 2
        %v1073 = vsel %vm1066, %v1070, %v1072
        %v1074 = vrot.slane %v446, 2
        %v1075 = vsel %vm1066, %v1072, %v1074
        %v1076 = vrot.slane %v447, 2
        %v1077 = vsel %vm1066, %v1074, %v1076
        %v1078 = vrot.slane %v448, 2
        %v1079 = vsel %vm1066, %v1076, %v1078
        %v1080 = vrot.slane %v449, 2
        %v1081 = vsel %vm1066, %v1078, %v1080
        %v1082 = vrot.slane %v450, 2
        %v1083 = vsel %vm1066, %v1080, %v1082
        %v1084 = vrot.slane %v451, 2
        %v1085 = vsel %vm1066, %v1082, %v1084
        %v1086 = vrot.slane %v452, 2
        %v1087 = vsel %vm1066, %v1084, %v1086
        %v1088 = vrot.slane %v453, 2
        %v1089 = vsel %vm1066, %v1086, %v1088
        %v1090 = vrot.slane %v454, 2
        %v1091 = vsel %vm1066, %v1088, %v1090
        %v1092 = vrot.slane %v455, 2
        %v1093 = vsel %vm1066, %v1090, %v1092
        %v1094 = vrot.slane %v456, 2
        %v1095 = vsel %vm1066, %v1092, %v1094
        %v1096 = vrot.slane %v457, 2
        %v1097 = vsel %vm1066, %v1094, %v1096
        %v1098 = vrot.slane %v458, 2
        %v1099 = vsel %vm1066, %v1096, %v1098
        %v1100 = vrot.slane %v459, 2
        %v1101 = vsel %vm1066, %v1098, %v1100
        %v1102 = vrot.slane %v460, 2
        %v1103 = vsel %vm1066, %v1100, %v1102
        %v1104 = vrot.slane %v461, 2
        %v1105 = vsel %vm1066, %v1102, %v1104
        %v1106 = vrot.slane %v462, 2
        %v1107 = vsel %vm1066, %v1104, %v1106
        %v1108 = vrot.slane %v463, 2
        %v1109 = vsel %vm1066, %v1106, %v1108
        %v1110 = vrot.slane %v464, 2
        %v1111 = vsel %vm1066, %v1108, %v1110
        %v1112 = vrot.slane %v465, 2
        %v1113 = vsel %vm1066, %v1110, %v1112
        %v1114 = vrot.slane %v466, 2
        %v1115 = vsel %vm1066, %v1112, %v1114
        %v1116 = vrot.slane %v467, 2
        %v1117 = vsel %vm1066, %v1114, %v1116
        %v1118 = vrot.slane %v468, 2
        %v1119 = vsel %vm1066, %v1116, %v1118
        %v1120 = vrot.slane %v469, 2
        %v1121 = vsel %vm1066, %v1118, %v1120
        %v1122 = vrot.slane %v470, 2
        %v1123 = vsel %vm1066, %v1120, %v1122
        %v1124 = vrot.slane %v471, 2
        %v1125 = vsel %vm1066, %v1122, %v1124
        %v1126 = vrot.slane %v472, 2
        %v1127 = vsel %vm1066, %v1124, %v1126
        %v1128 = vrot.slane %v473, 2
        %v1129 = vsel %vm1066, %v1126, %v1128
        %v1130 = vrot.slane %v476, 2
        %v1131 = vsel %vm1066, %v1128, %v1130
        %vm1132 = vcmask 523264
        %v1134 = vsel %vm1132, %v442, %v739
        %v1137 = vsel %vm1132, %v443, %v741
        %v1140 = vsel %vm1132, %v444, %v743
        %v1143 = vsel %vm1132, %v445, %v745
        %v1146 = vsel %vm1132, %v446, %v747
        %v1149 = vsel %vm1132, %v447, %v749
        %v1152 = vsel %vm1132, %v448, %v751
        %v1155 = vsel %vm1132, %v449, %v753
        %v1158 = vsel %vm1132, %v450, %v755
        %v1161 = vsel %vm1132, %v451, %v757
        %v1164 = vsel %vm1132, %v452, %v759
        %v1167 = vsel %vm1132, %v453, %v761
        %v1170 = vsel %vm1132, %v454, %v763
        %v1173 = vsel %vm1132, %v455, %v765
        %v1176 = vsel %vm1132, %v456, %v767
        %v1179 = vsel %vm1132, %v457, %v769
        %v1182 = vsel %vm1132, %v458, %v771
        %v1185 = vsel %vm1132, %v459, %v773
        %v1188 = vsel %vm1132, %v460, %v775
        %v1191 = vsel %vm1132, %v461, %v777
        %v1194 = vsel %vm1132, %v462, %v779
        %v1197 = vsel %vm1132, %v463, %v781
        %v1200 = vsel %vm1132, %v464, %v783
        %v1203 = vsel %vm1132, %v465, %v785
        %v1206 = vsel %vm1132, %v466, %v787
        %v1209 = vsel %vm1132, %v467, %v789
        %v1212 = vsel %vm1132, %v468, %v791
        %v1215 = vsel %vm1132, %v469, %v793
        %v1218 = vsel %vm1132, %v470, %v795
        %v1221 = vsel %vm1132, %v471, %v797
        %v1224 = vsel %vm1132, %v472, %v799
        %v1227 = vsel %vm1132, %v473, %v801
        %v1231 = vsel %vm1132, %v805, %v1003
        %v1235 = vsel %vm1132, %v807, %v1005
        %v1239 = vsel %vm1132, %v809, %v1007
        %v1243 = vsel %vm1132, %v811, %v1009
        %v1247 = vsel %vm1132, %v813, %v1011
        %v1251 = vsel %vm1132, %v815, %v1013
        %v1255 = vsel %vm1132, %v817, %v1015
        %v1259 = vsel %vm1132, %v819, %v1017
        %v1263 = vsel %vm1132, %v821, %v1019
        %v1267 = vsel %vm1132, %v823, %v1021
        %v1271 = vsel %vm1132, %v825, %v1023
        %v1275 = vsel %vm1132, %v827, %v1025
        %v1279 = vsel %vm1132, %v829, %v1027
        %v1283 = vsel %vm1132, %v831, %v1029
        %v1287 = vsel %vm1132, %v833, %v1031
        %v1291 = vsel %vm1132, %v835, %v1033
        %v1295 = vsel %vm1132, %v837, %v1035
        %v1299 = vsel %vm1132, %v839, %v1037
        %v1303 = vsel %vm1132, %v841, %v1039
        %v1307 = vsel %vm1132, %v843, %v1041
        %v1311 = vsel %vm1132, %v845, %v1043
        %v1315 = vsel %vm1132, %v847, %v1045
        %v1319 = vsel %vm1132, %v849, %v1047
        %v1323 = vsel %vm1132, %v851, %v1049
        %v1327 = vsel %vm1132, %v853, %v1051
        %v1331 = vsel %vm1132, %v855, %v1053
        %v1335 = vsel %vm1132, %v857, %v1055
        %v1339 = vsel %vm1132, %v859, %v1057
        %v1343 = vsel %vm1132, %v861, %v1059
        %v1347 = vsel %vm1132, %v863, %v1061
        %v1351 = vsel %vm1132, %v865, %v1063
        %v1355 = vsel %vm1132, %v867, %v1065
        %v1357 = vld [vmem:[%s1] sm:$0xf]
        %v1358 = vld [vmem:[%s1 + $0x4] sm:$0xf]
        %v1359 = vld [vmem:[%s1 + $0x8] sm:$0xf]
        %v1360 = vld [vmem:[%s1 + $0xc] sm:$0xf]
        %v1361 = vld [vmem:[%s1 + $0x10] sm:$0xf]
        %v1362 = vld [vmem:[%s1 + $0x14] sm:$0xf]
        %v1363 = vld [vmem:[%s1 + $0x18] sm:$0xf]
        %v1364 = vld [vmem:[%s1 + $0x1c] sm:$0xf]
        %v1365 = vld [vmem:[%s1 + $0x20] sm:$0xf]
        %v1366 = vld [vmem:[%s1 + $0x24] sm:$0xf]
        %v1367 = vld [vmem:[%s1 + $0x28] sm:$0xf]
        %v1368 = vld [vmem:[%s1 + $0x2c] sm:$0xf]
        %v1369 = vld [vmem:[%s1 + $0x30] sm:$0xf]
        %v1370 = vld [vmem:[%s1 + $0x34] sm:$0xf]
        %v1371 = vld [vmem:[%s1 + $0x38] sm:$0xf]
        %v1372 = vld [vmem:[%s1 + $0x3c] sm:$0xf]
        %v1373 = vld [vmem:[%s1 + $0x40] sm:$0xf]
        %v1374 = vld [vmem:[%s1 + $0x44] sm:$0xf]
        %v1375 = vld [vmem:[%s1 + $0x48] sm:$0xf]
        %v1376 = vld [vmem:[%s1 + $0x4c] sm:$0xf]
        %v1377 = vld [vmem:[%s1 + $0x50] sm:$0xf]
        %v1378 = vld [vmem:[%s1 + $0x54] sm:$0xf]
        %v1379 = vld [vmem:[%s1 + $0x58] sm:$0xf]
        %v1380 = vld [vmem:[%s1 + $0x5c] sm:$0xf]
        %v1381 = vld [vmem:[%s1 + $0x60] sm:$0xf]
        %v1382 = vld [vmem:[%s1 + $0x64] sm:$0xf]
        %v1383 = vld [vmem:[%s1 + $0x68] sm:$0xf]
        %v1384 = vld [vmem:[%s1 + $0x6c] sm:$0xf]
        %v1385 = vld [vmem:[%s1 + $0x70] sm:$0xf]
        %v1386 = vld [vmem:[%s1 + $0x74] sm:$0xf]
        %v1387 = vld [vmem:[%s1 + $0x78] sm:$0xf]
        %v1388 = vld [vmem:[%s1 + $0x7c] sm:$0xf]
        %v1389 = vld [vmem:[%s1 + $0x80] sm:$0xf]
        %v1390 = vld [vmem:[%s1 + $0x84] sm:$0xf]
        %v1391 = vld [vmem:[%s1 + $0x88] sm:$0xf]
        %v1392 = vld [vmem:[%s1 + $0x8c] sm:$0xf]
        %v1393 = vld [vmem:[%s1 + $0x90] sm:$0xf]
        %v1394 = vld [vmem:[%s1 + $0x94] sm:$0xf]
        %v1395 = vld [vmem:[%s1 + $0x98] sm:$0xf]
        %v1396 = vld [vmem:[%s1 + $0x9c] sm:$0xf]
        %v1437 = vunpack.c.l.b16 %v1357
        %v1438 = vunpack.c.l.b16 %v1358
        %v1439 = vunpack.c.l.b16 %v1359
        %v1440 = vunpack.c.l.b16 %v1360
        %v1441 = vunpack.c.l.b16 %v1361
        %v1442 = vunpack.c.l.b16 %v1362
        %v1443 = vunpack.c.l.b16 %v1363
        %v1444 = vunpack.c.l.b16 %v1364
        %v1445 = vunpack.c.l.b16 %v1365
        %v1446 = vunpack.c.l.b16 %v1366
        %v1447 = vunpack.c.l.b16 %v1367
        %v1448 = vunpack.c.l.b16 %v1368
        %v1449 = vunpack.c.l.b16 %v1369
        %v1450 = vunpack.c.l.b16 %v1370
        %v1451 = vunpack.c.l.b16 %v1371
        %v1452 = vunpack.c.l.b16 %v1372
        %v1453 = vunpack.c.l.b16 %v1373
        %v1454 = vunpack.c.l.b16 %v1374
        %v1455 = vunpack.c.l.b16 %v1375
        %v1456 = vunpack.c.l.b16 %v1376
        %v1457 = vunpack.c.l.b16 %v1377
        %v1458 = vunpack.c.l.b16 %v1378
        %v1459 = vunpack.c.l.b16 %v1379
        %v1460 = vunpack.c.l.b16 %v1380
        %v1461 = vunpack.c.l.b16 %v1381
        %v1462 = vunpack.c.l.b16 %v1382
        %v1463 = vunpack.c.l.b16 %v1383
        %v1464 = vunpack.c.l.b16 %v1384
        %v1465 = vunpack.c.l.b16 %v1385
        %v1466 = vunpack.c.l.b16 %v1386
        %v1467 = vunpack.c.l.b16 %v1387
        %v1468 = vunpack.c.l.b16 %v1388
        %v1469 = vunpack.c.l.b16 %v1389
        %v1470 = vunpack.c.l.b16 %v1390
        %v1471 = vunpack.c.l.b16 %v1391
        %v1472 = vunpack.c.l.b16 %v1392
        %v1473 = vunpack.c.l.b16 %v1393
        %v1474 = vunpack.c.l.b16 %v1394
        %v1475 = vunpack.c.l.b16 %v1395
        %v1476 = vunpack.c.l.b16 %v1396
        %v1477 = vpack.c.b16 %v1438, %v1437
        %v1478 = vpack.c.b16 %v1440, %v1439
        %v1479 = vpack.c.b16 %v1442, %v1441
        %v1480 = vpack.c.b16 %v1444, %v1443
        %v1481 = vpack.c.b16 %v1446, %v1445
        %v1482 = vpack.c.b16 %v1448, %v1447
        %v1483 = vpack.c.b16 %v1450, %v1449
        %v1484 = vpack.c.b16 %v1452, %v1451
        %v1485 = vpack.c.b16 %v1454, %v1453
        %v1486 = vpack.c.b16 %v1456, %v1455
        %v1487 = vpack.c.b16 %v1458, %v1457
        %v1488 = vpack.c.b16 %v1460, %v1459
        %v1489 = vpack.c.b16 %v1462, %v1461
        %v1490 = vpack.c.b16 %v1464, %v1463
        %v1491 = vpack.c.b16 %v1466, %v1465
        %v1492 = vpack.c.b16 %v1468, %v1467
        %v1493 = vpack.c.b16 %v1470, %v1469
        %v1494 = vpack.c.b16 %v1472, %v1471
        %v1495 = vpack.c.b16 %v1474, %v1473
        %v1496 = vpack.c.b16 %v1476, %v1475
        %v1518 = vsel %vm1132, %v1069, 0
        %v1521 = vsel %vm1132, %v1071, 0
        %v1524 = vsel %vm1132, %v1073, 0
        %v1527 = vsel %vm1132, %v1075, 0
        %v1530 = vsel %vm1132, %v1077, 0
        %v1533 = vsel %vm1132, %v1079, 0
        %v1536 = vsel %vm1132, %v1081, 0
        %v1539 = vsel %vm1132, %v1083, 0
        %v1542 = vsel %vm1132, %v1085, 0
        %v1545 = vsel %vm1132, %v1087, 0
        %v1548 = vsel %vm1132, %v1089, 0
        %v1551 = vsel %vm1132, %v1091, 0
        %v1554 = vsel %vm1132, %v1093, 0
        %v1557 = vsel %vm1132, %v1095, 0
        %v1560 = vsel %vm1132, %v1097, 0
        %v1563 = vsel %vm1132, %v1099, 0
        %v1566 = vsel %vm1132, %v1101, 0
        %v1569 = vsel %vm1132, %v1103, 0
        %v1572 = vsel %vm1132, %v1105, 0
        %v1575 = vsel %vm1132, %v1107, 0
        %v1578 = vsel %vm1132, %v1109, 0
        %v1581 = vsel %vm1132, %v1111, 0
        %v1584 = vsel %vm1132, %v1113, 0
        %v1587 = vsel %vm1132, %v1115, 0
        %v1590 = vsel %vm1132, %v1117, 0
        %v1593 = vsel %vm1132, %v1119, 0
        %v1596 = vsel %vm1132, %v1121, 0
        %v1599 = vsel %vm1132, %v1123, 0
        %v1602 = vsel %vm1132, %v1125, 0
        %v1605 = vsel %vm1132, %v1127, 0
        %v1608 = vsel %vm1132, %v1129, 0
        %v1611 = vsel %vm1132, %v1131, 0
        %1613 = vmatprep.subr.bf16.mxu0 0
        %1614 = vmatpush1.bf16.msra.mxu0 %v1484
        %1615 = vmatprep.subr.bf16.mxu0 0
        %1616 = vmatpush1.bf16.msra.mxu0 %v1483
        %1617 = vmatprep.subr.bf16.mxu0 0
        %1618 = vmatpush1.bf16.msra.mxu0 %v1482
        %1619 = vmatprep.subr.bf16.mxu0 0
        %1620 = vmatpush1.bf16.msra.mxu0 %v1481
        %1621 = vmatprep.subr.bf16.mxu0 0
        %1622 = vmatpush1.bf16.msra.mxu0 %v1480
        %1623 = vmatprep.subr.bf16.mxu0 0
        %1624 = vmatpush1.bf16.msra.mxu0 %v1479
        %1625 = vmatprep.subr.bf16.mxu0 0
        %1626 = vmatpush1.bf16.msra.mxu0 %v1478
        %1627 = vmatprep.subr.bf16.mxu0 0
        %1628 = vmatpush1.bf16.msra.mxu0 %v1477
        %1629 = vmatprep.subr.bf16.mxu0 0
        %1630 = vmatpush2.bf16.msra.mxu0 %v1492
        %1631 = vmatprep.subr.bf16.mxu0 0
        %1632 = vmatpush2.bf16.msra.mxu0 %v1491
        %1633 = vmatprep.subr.bf16.mxu0 0
        %1634 = vmatpush2.bf16.msra.mxu0 %v1490
        %1635 = vmatprep.subr.bf16.mxu0 0
        %1636 = vmatpush2.bf16.msra.mxu0 %v1489
        %1637 = vmatprep.subr.bf16.mxu0 0
        %1638 = vmatpush2.bf16.msra.mxu0 %v1488
        %1639 = vmatprep.subr.bf16.mxu0 0
        %1640 = vmatpush2.bf16.msra.mxu0 %v1487
        %1641 = vmatprep.subr.bf16.mxu0 0
        %1642 = vmatpush2.bf16.msra.mxu0 %v1486
        %1643 = vmatprep.subr.bf16.mxu0 0
        %1644 = vmatpush2.bf16.msra.mxu0 %v1485
        %1645 = vmatprep.mubr.bf16.mxu0 %v1231
        %1646 = vmatmul.mubr.bf16.gmra.mxu0 %v1134
        %v1647 = vpop.f32.mrf.mxu0
        %v1648 = vadd.f32 0.0, %v1647
        %v1649 = vpop.f32.mrf.mxu0
        %v1650 = vpop.f32.mrf.mxu0
        %v1651 = vadd.f32 0.0, %v1650
        %v1652 = vpop.f32.mrf.mxu0
        %1653 = vmatprep.mubr.bf16.mxu0 %v1235
        %1654 = vmatmul.mubr.bf16.gmra.mxu0 %v1137
        %v1655 = vpop.f32.mrf.mxu0
        %v1656 = vadd.f32 0.0, %v1655
        %v1657 = vpop.f32.mrf.mxu0
        %v1658 = vpop.f32.mrf.mxu0
        %v1659 = vadd.f32 0.0, %v1658
        %v1660 = vpop.f32.mrf.mxu0
        %1661 = vmatprep.mubr.bf16.mxu0 %v1239
        %1662 = vmatmul.mubr.bf16.gmra.mxu0 %v1140
        %v1663 = vpop.f32.mrf.mxu0
        %v1664 = vadd.f32 0.0, %v1663
        %v1665 = vpop.f32.mrf.mxu0
        %v1666 = vpop.f32.mrf.mxu0
        %v1667 = vadd.f32 0.0, %v1666
        %v1668 = vpop.f32.mrf.mxu0
        %1669 = vmatprep.mubr.bf16.mxu0 %v1243
        %1670 = vmatmul.mubr.bf16.gmra.mxu0 %v1143
        %v1671 = vpop.f32.mrf.mxu0
        %v1672 = vadd.f32 0.0, %v1671
        %v1673 = vpop.f32.mrf.mxu0
        %v1674 = vpop.f32.mrf.mxu0
        %v1675 = vadd.f32 0.0, %v1674
        %v1676 = vpop.f32.mrf.mxu0
        %1677 = vmatprep.mubr.bf16.mxu0 %v1247
        %1678 = vmatmul.mubr.bf16.gmra.mxu0 %v1146
        %v1679 = vpop.f32.mrf.mxu0
        %v1680 = vadd.f32 0.0, %v1679
        %v1681 = vpop.f32.mrf.mxu0
        %v1682 = vpop.f32.mrf.mxu0
        %v1683 = vadd.f32 0.0, %v1682
        %v1684 = vpop.f32.mrf.mxu0
        %1685 = vmatprep.mubr.bf16.mxu0 %v1251
        %1686 = vmatmul.mubr.bf16.gmra.mxu0 %v1149
        %v1687 = vpop.f32.mrf.mxu0
        %v1688 = vadd.f32 0.0, %v1687
        %v1689 = vpop.f32.mrf.mxu0
        %v1690 = vpop.f32.mrf.mxu0
        %v1691 = vadd.f32 0.0, %v1690
        %v1692 = vpop.f32.mrf.mxu0
        %1693 = vmatprep.mubr.bf16.mxu0 %v1255
        %1694 = vmatmul.mubr.bf16.gmra.mxu0 %v1152
        %v1695 = vpop.f32.mrf.mxu0
        %v1696 = vadd.f32 0.0, %v1695
        %v1697 = vpop.f32.mrf.mxu0
        %v1698 = vpop.f32.mrf.mxu0
        %v1699 = vadd.f32 0.0, %v1698
        %v1700 = vpop.f32.mrf.mxu0
        %1701 = vmatprep.mubr.bf16.mxu0 %v1259
        %1702 = vmatmul.mubr.bf16.gmra.mxu0 %v1155
        %v1703 = vpop.f32.mrf.mxu0
        %v1704 = vadd.f32 0.0, %v1703
        %v1705 = vpop.f32.mrf.mxu0
        %v1706 = vpop.f32.mrf.mxu0
        %v1707 = vadd.f32 0.0, %v1706
        %v1708 = vpop.f32.mrf.mxu0
        %1709 = vmatprep.mubr.bf16.mxu0 %v1263
        %1710 = vmatmul.mubr.bf16.gmra.mxu0 %v1158
        %v1711 = vpop.f32.mrf.mxu0
        %v1712 = vadd.f32 0.0, %v1711
        %v1713 = vpop.f32.mrf.mxu0
        %v1714 = vpop.f32.mrf.mxu0
        %v1715 = vadd.f32 0.0, %v1714
        %v1716 = vpop.f32.mrf.mxu0
        %1717 = vmatprep.mubr.bf16.mxu0 %v1267
        %1718 = vmatmul.mubr.bf16.gmra.mxu0 %v1161
        %v1719 = vpop.f32.mrf.mxu0
        %v1720 = vadd.f32 0.0, %v1719
        %v1721 = vpop.f32.mrf.mxu0
        %v1722 = vpop.f32.mrf.mxu0
        %v1723 = vadd.f32 0.0, %v1722
        %v1724 = vpop.f32.mrf.mxu0
        %1725 = vmatprep.mubr.bf16.mxu0 %v1271
        %1726 = vmatmul.mubr.bf16.gmra.mxu0 %v1164
        %v1727 = vpop.f32.mrf.mxu0
        %v1728 = vadd.f32 0.0, %v1727
        %v1729 = vpop.f32.mrf.mxu0
        %v1730 = vpop.f32.mrf.mxu0
        %v1731 = vadd.f32 0.0, %v1730
        %v1732 = vpop.f32.mrf.mxu0
        %1733 = vmatprep.mubr.bf16.mxu0 %v1275
        %1734 = vmatmul.mubr.bf16.gmra.mxu0 %v1167
        %v1735 = vpop.f32.mrf.mxu0
        %v1736 = vadd.f32 0.0, %v1735
        %v1737 = vpop.f32.mrf.mxu0
        %v1738 = vpop.f32.mrf.mxu0
        %v1739 = vadd.f32 0.0, %v1738
        %v1740 = vpop.f32.mrf.mxu0
        %1741 = vmatprep.mubr.bf16.mxu0 %v1279
        %1742 = vmatmul.mubr.bf16.gmra.mxu0 %v1170
        %v1743 = vpop.f32.mrf.mxu0
        %v1744 = vadd.f32 0.0, %v1743
        %v1745 = vpop.f32.mrf.mxu0
        %v1746 = vpop.f32.mrf.mxu0
        %v1747 = vadd.f32 0.0, %v1746
        %v1748 = vpop.f32.mrf.mxu0
        %1749 = vmatprep.mubr.bf16.mxu0 %v1283
        %1750 = vmatmul.mubr.bf16.gmra.mxu0 %v1173
        %v1751 = vpop.f32.mrf.mxu0
        %v1752 = vadd.f32 0.0, %v1751
        %v1753 = vpop.f32.mrf.mxu0
        %v1754 = vpop.f32.mrf.mxu0
        %v1755 = vadd.f32 0.0, %v1754
        %v1756 = vpop.f32.mrf.mxu0
        %1757 = vmatprep.mubr.bf16.mxu0 %v1287
        %1758 = vmatmul.mubr.bf16.gmra.mxu0 %v1176
        %v1759 = vpop.f32.mrf.mxu0
        %v1760 = vadd.f32 0.0, %v1759
        %v1761 = vpop.f32.mrf.mxu0
        %v1762 = vpop.f32.mrf.mxu0
        %v1763 = vadd.f32 0.0, %v1762
        %v1764 = vpop.f32.mrf.mxu0
        %1765 = vmatprep.mubr.bf16.mxu0 %v1291
        %1766 = vmatmul.mubr.bf16.gmra.mxu0 %v1179
        %v1767 = vpop.f32.mrf.mxu0
        %v1768 = vadd.f32 0.0, %v1767
        %v1769 = vpop.f32.mrf.mxu0
        %v1770 = vpop.f32.mrf.mxu0
        %v1771 = vadd.f32 0.0, %v1770
        %v1772 = vpop.f32.mrf.mxu0
        %1773 = vmatprep.mubr.bf16.mxu0 %v1295
        %1774 = vmatmul.mubr.bf16.gmra.mxu0 %v1182
        %v1775 = vpop.f32.mrf.mxu0
        %v1776 = vadd.f32 0.0, %v1775
        %v1777 = vpop.f32.mrf.mxu0
        %v1778 = vpop.f32.mrf.mxu0
        %v1779 = vadd.f32 0.0, %v1778
        %v1780 = vpop.f32.mrf.mxu0
        %1781 = vmatprep.mubr.bf16.mxu0 %v1299
        %1782 = vmatmul.mubr.bf16.gmra.mxu0 %v1185
        %v1783 = vpop.f32.mrf.mxu0
        %v1784 = vadd.f32 0.0, %v1783
        %v1785 = vpop.f32.mrf.mxu0
        %v1786 = vpop.f32.mrf.mxu0
        %v1787 = vadd.f32 0.0, %v1786
        %v1788 = vpop.f32.mrf.mxu0
        %1789 = vmatprep.mubr.bf16.mxu0 %v1303
        %1790 = vmatmul.mubr.bf16.gmra.mxu0 %v1188
        %v1791 = vpop.f32.mrf.mxu0
        %v1792 = vadd.f32 0.0, %v1791
        %v1793 = vpop.f32.mrf.mxu0
        %v1794 = vpop.f32.mrf.mxu0
        %v1795 = vadd.f32 0.0, %v1794
        %v1796 = vpop.f32.mrf.mxu0
        %1797 = vmatprep.mubr.bf16.mxu0 %v1307
        %1798 = vmatmul.mubr.bf16.gmra.mxu0 %v1191
        %v1799 = vpop.f32.mrf.mxu0
        %v1800 = vadd.f32 0.0, %v1799
        %v1801 = vpop.f32.mrf.mxu0
        %v1802 = vpop.f32.mrf.mxu0
        %v1803 = vadd.f32 0.0, %v1802
        %v1804 = vpop.f32.mrf.mxu0
        %1805 = vmatprep.mubr.bf16.mxu0 %v1311
        %1806 = vmatmul.mubr.bf16.gmra.mxu0 %v1194
        %v1807 = vpop.f32.mrf.mxu0
        %v1808 = vadd.f32 0.0, %v1807
        %v1809 = vpop.f32.mrf.mxu0
        %v1810 = vpop.f32.mrf.mxu0
        %v1811 = vadd.f32 0.0, %v1810
        %v1812 = vpop.f32.mrf.mxu0
        %1813 = vmatprep.mubr.bf16.mxu0 %v1315
        %1814 = vmatmul.mubr.bf16.gmra.mxu0 %v1197
        %v1815 = vpop.f32.mrf.mxu0
        %v1816 = vadd.f32 0.0, %v1815
        %v1817 = vpop.f32.mrf.mxu0
        %v1818 = vpop.f32.mrf.mxu0
        %v1819 = vadd.f32 0.0, %v1818
        %v1820 = vpop.f32.mrf.mxu0
        %1821 = vmatprep.mubr.bf16.mxu0 %v1319
        %1822 = vmatmul.mubr.bf16.gmra.mxu0 %v1200
        %v1823 = vpop.f32.mrf.mxu0
        %v1824 = vadd.f32 0.0, %v1823
        %v1825 = vpop.f32.mrf.mxu0
        %v1826 = vpop.f32.mrf.mxu0
        %v1827 = vadd.f32 0.0, %v1826
        %v1828 = vpop.f32.mrf.mxu0
        %1829 = vmatprep.mubr.bf16.mxu0 %v1323
        %1830 = vmatmul.mubr.bf16.gmra.mxu0 %v1203
        %v1831 = vpop.f32.mrf.mxu0
        %v1832 = vadd.f32 0.0, %v1831
        %v1833 = vpop.f32.mrf.mxu0
        %v1834 = vpop.f32.mrf.mxu0
        %v1835 = vadd.f32 0.0, %v1834
        %v1836 = vpop.f32.mrf.mxu0
        %1837 = vmatprep.mubr.bf16.mxu0 %v1327
        %1838 = vmatmul.mubr.bf16.gmra.mxu0 %v1206
        %v1839 = vpop.f32.mrf.mxu0
        %v1840 = vadd.f32 0.0, %v1839
        %v1841 = vpop.f32.mrf.mxu0
        %v1842 = vpop.f32.mrf.mxu0
        %v1843 = vadd.f32 0.0, %v1842
        %v1844 = vpop.f32.mrf.mxu0
        %1845 = vmatprep.mubr.bf16.mxu0 %v1331
        %1846 = vmatmul.mubr.bf16.gmra.mxu0 %v1209
        %v1847 = vpop.f32.mrf.mxu0
        %v1848 = vadd.f32 0.0, %v1847
        %v1849 = vpop.f32.mrf.mxu0
        %v1850 = vpop.f32.mrf.mxu0
        %v1851 = vadd.f32 0.0, %v1850
        %v1852 = vpop.f32.mrf.mxu0
        %1853 = vmatprep.mubr.bf16.mxu0 %v1335
        %1854 = vmatmul.mubr.bf16.gmra.mxu0 %v1212
        %v1855 = vpop.f32.mrf.mxu0
        %v1856 = vadd.f32 0.0, %v1855
        %v1857 = vpop.f32.mrf.mxu0
        %v1858 = vpop.f32.mrf.mxu0
        %v1859 = vadd.f32 0.0, %v1858
        %v1860 = vpop.f32.mrf.mxu0
        %1861 = vmatprep.mubr.bf16.mxu0 %v1339
        %1862 = vmatmul.mubr.bf16.gmra.mxu0 %v1215
        %v1863 = vpop.f32.mrf.mxu0
        %v1864 = vadd.f32 0.0, %v1863
        %v1865 = vpop.f32.mrf.mxu0
        %v1866 = vpop.f32.mrf.mxu0
        %v1867 = vadd.f32 0.0, %v1866
        %v1868 = vpop.f32.mrf.mxu0
        %1869 = vmatprep.mubr.bf16.mxu0 %v1343
        %1870 = vmatmul.mubr.bf16.gmra.mxu0 %v1218
        %v1871 = vpop.f32.mrf.mxu0
        %v1872 = vadd.f32 0.0, %v1871
        %v1873 = vpop.f32.mrf.mxu0
        %v1874 = vpop.f32.mrf.mxu0
        %v1875 = vadd.f32 0.0, %v1874
        %v1876 = vpop.f32.mrf.mxu0
        %1877 = vmatprep.mubr.bf16.mxu0 %v1347
        %1878 = vmatmul.mubr.bf16.gmra.mxu0 %v1221
        %v1879 = vpop.f32.mrf.mxu0
        %v1880 = vadd.f32 0.0, %v1879
        %v1881 = vpop.f32.mrf.mxu0
        %v1882 = vpop.f32.mrf.mxu0
        %v1883 = vadd.f32 0.0, %v1882
        %v1884 = vpop.f32.mrf.mxu0
        %1885 = vmatprep.mubr.bf16.mxu0 %v1351
        %1886 = vmatmul.mubr.bf16.gmra.mxu0 %v1224
        %v1887 = vpop.f32.mrf.mxu0
        %v1888 = vadd.f32 0.0, %v1887
        %v1889 = vpop.f32.mrf.mxu0
        %v1890 = vpop.f32.mrf.mxu0
        %v1891 = vadd.f32 0.0, %v1890
        %v1892 = vpop.f32.mrf.mxu0
        %1893 = vmatprep.mubr.bf16.mxu0 %v1355
        %1894 = vmatmul.mubr.bf16.gmra.mxu0 %v1227
        %v1895 = vpop.f32.mrf.mxu0
        %v1896 = vadd.f32 0.0, %v1895
        %v1897 = vpop.f32.mrf.mxu0
        %v1898 = vpop.f32.mrf.mxu0
        %v1899 = vadd.f32 0.0, %v1898
        %v1900 = vpop.f32.mrf.mxu0
        %1901 = vdwg.mxu0
        %1902 = vmatprep.subr.bf16.mxu0 0
        %1903 = vmatpush1.bf16.msra.mxu0 0
        %1904 = vmatprep.subr.bf16.mxu0 0
        %1905 = vmatpush1.bf16.msra.mxu0 0
        %1906 = vmatprep.subr.bf16.mxu0 0
        %1907 = vmatpush1.bf16.msra.mxu0 0
        %1908 = vmatprep.subr.bf16.mxu0 0
        %1909 = vmatpush1.bf16.msra.mxu0 0
        %1910 = vmatprep.subr.bf16.mxu0 0
        %1911 = vmatpush1.bf16.msra.mxu0 %v1496
        %1912 = vmatprep.subr.bf16.mxu0 0
        %1913 = vmatpush1.bf16.msra.mxu0 %v1495
        %1914 = vmatprep.subr.bf16.mxu0 0
        %1915 = vmatpush1.bf16.msra.mxu0 %v1494
        %1916 = vmatprep.subr.bf16.mxu0 0
        %1917 = vmatpush1.bf16.msra.mxu0 %v1493
        %1918 = vmatprep.subr.bf16.mxu0 0
        %1919 = vmatpush2.bf16.msra.mxu0 0
        %1920 = vmatprep.subr.bf16.mxu0 0
        %1921 = vmatpush2.bf16.msra.mxu0 0
        %1922 = vmatprep.subr.bf16.mxu0 0
        %1923 = vmatpush2.bf16.msra.mxu0 0
        %1924 = vmatprep.subr.bf16.mxu0 0
        %1925 = vmatpush2.bf16.msra.mxu0 0
        %1926 = vmatprep.subr.bf16.mxu0 0
        %1927 = vmatpush2.bf16.msra.mxu0 0
        %1928 = vmatprep.subr.bf16.mxu0 0
        %1929 = vmatpush2.bf16.msra.mxu0 0
        %1930 = vmatprep.subr.bf16.mxu0 0
        %1931 = vmatpush2.bf16.msra.mxu0 0
        %1932 = vmatprep.subr.bf16.mxu0 0
        %1933 = vmatpush2.bf16.msra.mxu0 0
        %1934 = vmatprep.mubr.bf16.mxu0 0
        %1935 = vmatmul.mubr.bf16.gmra.mxu0 %v1518
        %v1936 = vpop.f32.mrf.mxu0
        %v1937 = vadd.f32 %v1648, %v1936
        %v1938 = vpop.f32.mrf.mxu0
        %v1939 = vpop.f32.mrf.mxu0
        %v1940 = vadd.f32 %v1651, %v1939
        %v1941 = vpop.f32.mrf.mxu0
        %1942 = vmatprep.mubr.bf16.mxu0 0
        %1943 = vmatmul.mubr.bf16.gmra.mxu0 %v1521
        %v1944 = vpop.f32.mrf.mxu0
        %v1945 = vadd.f32 %v1656, %v1944
        %v1946 = vpop.f32.mrf.mxu0
        %v1947 = vpop.f32.mrf.mxu0
        %v1948 = vadd.f32 %v1659, %v1947
        %v1949 = vpop.f32.mrf.mxu0
        %1950 = vmatprep.mubr.bf16.mxu0 0
        %1951 = vmatmul.mubr.bf16.gmra.mxu0 %v1524
        %v1952 = vpop.f32.mrf.mxu0
        %v1953 = vadd.f32 %v1664, %v1952
        %v1954 = vpop.f32.mrf.mxu0
        %v1955 = vpop.f32.mrf.mxu0
        %v1956 = vadd.f32 %v1667, %v1955
        %v1957 = vpop.f32.mrf.mxu0
        %1958 = vmatprep.mubr.bf16.mxu0 0
        %1959 = vmatmul.mubr.bf16.gmra.mxu0 %v1527
        %v1960 = vpop.f32.mrf.mxu0
        %v1961 = vadd.f32 %v1672, %v1960
        %v1962 = vpop.f32.mrf.mxu0
        %v1963 = vpop.f32.mrf.mxu0
        %v1964 = vadd.f32 %v1675, %v1963
        %v1965 = vpop.f32.mrf.mxu0
        %1966 = vmatprep.mubr.bf16.mxu0 0
        %1967 = vmatmul.mubr.bf16.gmra.mxu0 %v1530
        %v1968 = vpop.f32.mrf.mxu0
        %v1969 = vadd.f32 %v1680, %v1968
        %v1970 = vpop.f32.mrf.mxu0
        %v1971 = vpop.f32.mrf.mxu0
        %v1972 = vadd.f32 %v1683, %v1971
        %v1973 = vpop.f32.mrf.mxu0
        %1974 = vmatprep.mubr.bf16.mxu0 0
        %1975 = vmatmul.mubr.bf16.gmra.mxu0 %v1533
        %v1976 = vpop.f32.mrf.mxu0
        %v1977 = vadd.f32 %v1688, %v1976
        %v1978 = vpop.f32.mrf.mxu0
        %v1979 = vpop.f32.mrf.mxu0
        %v1980 = vadd.f32 %v1691, %v1979
        %v1981 = vpop.f32.mrf.mxu0
        %1982 = vmatprep.mubr.bf16.mxu0 0
        %1983 = vmatmul.mubr.bf16.gmra.mxu0 %v1536
        %v1984 = vpop.f32.mrf.mxu0
        %v1985 = vadd.f32 %v1696, %v1984
        %v1986 = vpop.f32.mrf.mxu0
        %v1987 = vpop.f32.mrf.mxu0
        %v1988 = vadd.f32 %v1699, %v1987
        %v1989 = vpop.f32.mrf.mxu0
        %1990 = vmatprep.mubr.bf16.mxu0 0
        %1991 = vmatmul.mubr.bf16.gmra.mxu0 %v1539
        %v1992 = vpop.f32.mrf.mxu0
        %v1993 = vadd.f32 %v1704, %v1992
        %v1994 = vpop.f32.mrf.mxu0
        %v1995 = vpop.f32.mrf.mxu0
        %v1996 = vadd.f32 %v1707, %v1995
        %v1997 = vpop.f32.mrf.mxu0
        %1998 = vmatprep.mubr.bf16.mxu0 0
        %1999 = vmatmul.mubr.bf16.gmra.mxu0 %v1542
        %v2000 = vpop.f32.mrf.mxu0
        %v2001 = vadd.f32 %v1712, %v2000
        %v2002 = vpop.f32.mrf.mxu0
        %v2003 = vpop.f32.mrf.mxu0
        %v2004 = vadd.f32 %v1715, %v2003
        %v2005 = vpop.f32.mrf.mxu0
        %2006 = vmatprep.mubr.bf16.mxu0 0
        %2007 = vmatmul.mubr.bf16.gmra.mxu0 %v1545
        %v2008 = vpop.f32.mrf.mxu0
        %v2009 = vadd.f32 %v1720, %v2008
        %v2010 = vpop.f32.mrf.mxu0
        %v2011 = vpop.f32.mrf.mxu0
        %v2012 = vadd.f32 %v1723, %v2011
        %v2013 = vpop.f32.mrf.mxu0
        %2014 = vmatprep.mubr.bf16.mxu0 0
        %2015 = vmatmul.mubr.bf16.gmra.mxu0 %v1548
        %v2016 = vpop.f32.mrf.mxu0
        %v2017 = vadd.f32 %v1728, %v2016
        %v2018 = vpop.f32.mrf.mxu0
        %v2019 = vpop.f32.mrf.mxu0
        %v2020 = vadd.f32 %v1731, %v2019
        %v2021 = vpop.f32.mrf.mxu0
        %2022 = vmatprep.mubr.bf16.mxu0 0
        %2023 = vmatmul.mubr.bf16.gmra.mxu0 %v1551
        %v2024 = vpop.f32.mrf.mxu0
        %v2025 = vadd.f32 %v1736, %v2024
        %v2026 = vpop.f32.mrf.mxu0
        %v2027 = vpop.f32.mrf.mxu0
        %v2028 = vadd.f32 %v1739, %v2027
        %v2029 = vpop.f32.mrf.mxu0
        %2030 = vmatprep.mubr.bf16.mxu0 0
        %2031 = vmatmul.mubr.bf16.gmra.mxu0 %v1554
        %v2032 = vpop.f32.mrf.mxu0
        %v2033 = vadd.f32 %v1744, %v2032
        %v2034 = vpop.f32.mrf.mxu0
        %v2035 = vpop.f32.mrf.mxu0
        %v2036 = vadd.f32 %v1747, %v2035
        %v2037 = vpop.f32.mrf.mxu0
        %2038 = vmatprep.mubr.bf16.mxu0 0
        %2039 = vmatmul.mubr.bf16.gmra.mxu0 %v1557
        %v2040 = vpop.f32.mrf.mxu0
        %v2041 = vadd.f32 %v1752, %v2040
        %v2042 = vpop.f32.mrf.mxu0
        %v2043 = vpop.f32.mrf.mxu0
        %v2044 = vadd.f32 %v1755, %v2043
        %v2045 = vpop.f32.mrf.mxu0
        %2046 = vmatprep.mubr.bf16.mxu0 0
        %2047 = vmatmul.mubr.bf16.gmra.mxu0 %v1560
        %v2048 = vpop.f32.mrf.mxu0
        %v2049 = vadd.f32 %v1760, %v2048
        %v2050 = vpop.f32.mrf.mxu0
        %v2051 = vpop.f32.mrf.mxu0
        %v2052 = vadd.f32 %v1763, %v2051
        %v2053 = vpop.f32.mrf.mxu0
        %2054 = vmatprep.mubr.bf16.mxu0 0
        %2055 = vmatmul.mubr.bf16.gmra.mxu0 %v1563
        %v2056 = vpop.f32.mrf.mxu0
        %v2057 = vadd.f32 %v1768, %v2056
        %v2058 = vpop.f32.mrf.mxu0
        %v2059 = vpop.f32.mrf.mxu0
        %v2060 = vadd.f32 %v1771, %v2059
        %v2061 = vpop.f32.mrf.mxu0
        %2062 = vmatprep.mubr.bf16.mxu0 0
        %2063 = vmatmul.mubr.bf16.gmra.mxu0 %v1566
        %v2064 = vpop.f32.mrf.mxu0
        %v2065 = vadd.f32 %v1776, %v2064
        %v2066 = vpop.f32.mrf.mxu0
        %v2067 = vpop.f32.mrf.mxu0
        %v2068 = vadd.f32 %v1779, %v2067
        %v2069 = vpop.f32.mrf.mxu0
        %2070 = vmatprep.mubr.bf16.mxu0 0
        %2071 = vmatmul.mubr.bf16.gmra.mxu0 %v1569
        %v2072 = vpop.f32.mrf.mxu0
        %v2073 = vadd.f32 %v1784, %v2072
        %v2074 = vpop.f32.mrf.mxu0
        %v2075 = vpop.f32.mrf.mxu0
        %v2076 = vadd.f32 %v1787, %v2075
        %v2077 = vpop.f32.mrf.mxu0
        %2078 = vmatprep.mubr.bf16.mxu0 0
        %2079 = vmatmul.mubr.bf16.gmra.mxu0 %v1572
        %v2080 = vpop.f32.mrf.mxu0
        %v2081 = vadd.f32 %v1792, %v2080
        %v2082 = vpop.f32.mrf.mxu0
        %v2083 = vpop.f32.mrf.mxu0
        %v2084 = vadd.f32 %v1795, %v2083
        %v2085 = vpop.f32.mrf.mxu0
        %2086 = vmatprep.mubr.bf16.mxu0 0
        %2087 = vmatmul.mubr.bf16.gmra.mxu0 %v1575
        %v2088 = vpop.f32.mrf.mxu0
        %v2089 = vadd.f32 %v1800, %v2088
        %v2090 = vpop.f32.mrf.mxu0
        %v2091 = vpop.f32.mrf.mxu0
        %v2092 = vadd.f32 %v1803, %v2091
        %v2093 = vpop.f32.mrf.mxu0
        %2094 = vmatprep.mubr.bf16.mxu0 0
        %2095 = vmatmul.mubr.bf16.gmra.mxu0 %v1578
        %v2096 = vpop.f32.mrf.mxu0
        %v2097 = vadd.f32 %v1808, %v2096
        %v2098 = vpop.f32.mrf.mxu0
        %v2099 = vpop.f32.mrf.mxu0
        %v2100 = vadd.f32 %v1811, %v2099
        %v2101 = vpop.f32.mrf.mxu0
        %2102 = vmatprep.mubr.bf16.mxu0 0
        %2103 = vmatmul.mubr.bf16.gmra.mxu0 %v1581
        %v2104 = vpop.f32.mrf.mxu0
        %v2105 = vadd.f32 %v1816, %v2104
        %v2106 = vpop.f32.mrf.mxu0
        %v2107 = vpop.f32.mrf.mxu0
        %v2108 = vadd.f32 %v1819, %v2107
        %v2109 = vpop.f32.mrf.mxu0
        %2110 = vmatprep.mubr.bf16.mxu0 0
        %2111 = vmatmul.mubr.bf16.gmra.mxu0 %v1584
        %v2112 = vpop.f32.mrf.mxu0
        %v2113 = vadd.f32 %v1824, %v2112
        %v2114 = vpop.f32.mrf.mxu0
        %v2115 = vpop.f32.mrf.mxu0
        %v2116 = vadd.f32 %v1827, %v2115
        %v2117 = vpop.f32.mrf.mxu0
        %2118 = vmatprep.mubr.bf16.mxu0 0
        %2119 = vmatmul.mubr.bf16.gmra.mxu0 %v1587
        %v2120 = vpop.f32.mrf.mxu0
        %v2121 = vadd.f32 %v1832, %v2120
        %v2122 = vpop.f32.mrf.mxu0
        %v2123 = vpop.f32.mrf.mxu0
        %v2124 = vadd.f32 %v1835, %v2123
        %v2125 = vpop.f32.mrf.mxu0
        %2126 = vmatprep.mubr.bf16.mxu0 0
        %2127 = vmatmul.mubr.bf16.gmra.mxu0 %v1590
        %v2128 = vpop.f32.mrf.mxu0
        %v2129 = vadd.f32 %v1840, %v2128
        %v2130 = vpop.f32.mrf.mxu0
        %v2131 = vpop.f32.mrf.mxu0
        %v2132 = vadd.f32 %v1843, %v2131
        %v2133 = vpop.f32.mrf.mxu0
        %2134 = vmatprep.mubr.bf16.mxu0 0
        %2135 = vmatmul.mubr.bf16.gmra.mxu0 %v1593
        %v2136 = vpop.f32.mrf.mxu0
        %v2137 = vadd.f32 %v1848, %v2136
        %v2138 = vpop.f32.mrf.mxu0
        %v2139 = vpop.f32.mrf.mxu0
        %v2140 = vadd.f32 %v1851, %v2139
        %v2141 = vpop.f32.mrf.mxu0
        %2142 = vmatprep.mubr.bf16.mxu0 0
        %2143 = vmatmul.mubr.bf16.gmra.mxu0 %v1596
        %v2144 = vpop.f32.mrf.mxu0
        %v2145 = vadd.f32 %v1856, %v2144
        %v2146 = vpop.f32.mrf.mxu0
        %v2147 = vpop.f32.mrf.mxu0
        %v2148 = vadd.f32 %v1859, %v2147
        %v2149 = vpop.f32.mrf.mxu0
        %2150 = vmatprep.mubr.bf16.mxu0 0
        %2151 = vmatmul.mubr.bf16.gmra.mxu0 %v1599
        %v2152 = vpop.f32.mrf.mxu0
        %v2153 = vadd.f32 %v1864, %v2152
        %v2154 = vpop.f32.mrf.mxu0
        %v2155 = vpop.f32.mrf.mxu0
        %v2156 = vadd.f32 %v1867, %v2155
        %v2157 = vpop.f32.mrf.mxu0
        %2158 = vmatprep.mubr.bf16.mxu0 0
        %2159 = vmatmul.mubr.bf16.gmra.mxu0 %v1602
        %v2160 = vpop.f32.mrf.mxu0
        %v2161 = vadd.f32 %v1872, %v2160
        %v2162 = vpop.f32.mrf.mxu0
        %v2163 = vpop.f32.mrf.mxu0
        %v2164 = vadd.f32 %v1875, %v2163
        %v2165 = vpop.f32.mrf.mxu0
        %2166 = vmatprep.mubr.bf16.mxu0 0
        %2167 = vmatmul.mubr.bf16.gmra.mxu0 %v1605
        %v2168 = vpop.f32.mrf.mxu0
        %v2169 = vadd.f32 %v1880, %v2168
        %v2170 = vpop.f32.mrf.mxu0
        %v2171 = vpop.f32.mrf.mxu0
        %v2172 = vadd.f32 %v1883, %v2171
        %v2173 = vpop.f32.mrf.mxu0
        %2174 = vmatprep.mubr.bf16.mxu0 0
        %2175 = vmatmul.mubr.bf16.gmra.mxu0 %v1608
        %v2176 = vpop.f32.mrf.mxu0
        %v2177 = vadd.f32 %v1888, %v2176
        %v2178 = vpop.f32.mrf.mxu0
        %v2179 = vpop.f32.mrf.mxu0
        %v2180 = vadd.f32 %v1891, %v2179
        %v2181 = vpop.f32.mrf.mxu0
        %2182 = vmatprep.mubr.bf16.mxu0 0
        %2183 = vmatmul.mubr.bf16.gmra.mxu0 %v1611
        %v2184 = vpop.f32.mrf.mxu0
        %v2185 = vadd.f32 %v1896, %v2184
        %v2186 = vpop.f32.mrf.mxu0
        %v2187 = vpop.f32.mrf.mxu0
        %v2188 = vadd.f32 %v1899, %v2187
        %v2189 = vpop.f32.mrf.mxu0
        %2190 = vdwg.mxu0
        %2191 = vst.msk [vmem:[#allocation2] sm:$0xff] %vm1132, %v1937
        %2192 = vst.msk [vmem:[#allocation2 + $0x8] sm:$0xff] %vm1132, %v1940
        %2193 = vst.msk [vmem:[#allocation2 + $0x10] sm:$0xff] %vm1132, %v1945
        %2194 = vst.msk [vmem:[#allocation2 + $0x18] sm:$0xff] %vm1132, %v1948
        %2195 = vst.msk [vmem:[#allocation2 + $0x20] sm:$0xff] %vm1132, %v1953
        %2196 = vst.msk [vmem:[#allocation2 + $0x28] sm:$0xff] %vm1132, %v1956
        %2197 = vst.msk [vmem:[#allocation2 + $0x30] sm:$0xff] %vm1132, %v1961
        %2198 = vst.msk [vmem:[#allocation2 + $0x38] sm:$0xff] %vm1132, %v1964
        %2199 = vst.msk [vmem:[#allocation2 + $0x40] sm:$0xff] %vm1132, %v1969
        %2200 = vst.msk [vmem:[#allocation2 + $0x48] sm:$0xff] %vm1132, %v1972
        %2201 = vst.msk [vmem:[#allocation2 + $0x50] sm:$0xff] %vm1132, %v1977
        %2202 = vst.msk [vmem:[#allocation2 + $0x58] sm:$0xff] %vm1132, %v1980
        %2203 = vst.msk [vmem:[#allocation2 + $0x60] sm:$0xff] %vm1132, %v1985
        %2204 = vst.msk [vmem:[#allocation2 + $0x68] sm:$0xff] %vm1132, %v1988
        %2205 = vst.msk [vmem:[#allocation2 + $0x70] sm:$0xff] %vm1132, %v1993
        %2206 = vst.msk [vmem:[#allocation2 + $0x78] sm:$0xff] %vm1132, %v1996
        %2207 = vst.msk [vmem:[#allocation2 + $0x80] sm:$0xff] %vm1132, %v2001
        %2208 = vst.msk [vmem:[#allocation2 + $0x88] sm:$0xff] %vm1132, %v2004
        %2209 = vst.msk [vmem:[#allocation2 + $0x90] sm:$0xff] %vm1132, %v2009
        %2210 = vst.msk [vmem:[#allocation2 + $0x98] sm:$0xff] %vm1132, %v2012
        %2211 = vst.msk [vmem:[#allocation2 + $0xa0] sm:$0xff] %vm1132, %v2017
        %2212 = vst.msk [vmem:[#allocation2 + $0xa8] sm:$0xff] %vm1132, %v2020
        %2213 = vst.msk [vmem:[#allocation2 + $0xb0] sm:$0xff] %vm1132, %v2025
        %2214 = vst.msk [vmem:[#allocation2 + $0xb8] sm:$0xff] %vm1132, %v2028
        %2215 = vst.msk [vmem:[#allocation2 + $0xc0] sm:$0xff] %vm1132, %v2033
        %2216 = vst.msk [vmem:[#allocation2 + $0xc8] sm:$0xff] %vm1132, %v2036
        %2217 = vst.msk [vmem:[#allocation2 + $0xd0] sm:$0xff] %vm1132, %v2041
        %2218 = vst.msk [vmem:[#allocation2 + $0xd8] sm:$0xff] %vm1132, %v2044
        %2219 = vst.msk [vmem:[#allocation2 + $0xe0] sm:$0xff] %vm1132, %v2049
        %2220 = vst.msk [vmem:[#allocation2 + $0xe8] sm:$0xff] %vm1132, %v2052
        %2221 = vst.msk [vmem:[#allocation2 + $0xf0] sm:$0xff] %vm1132, %v2057
        %2222 = vst.msk [vmem:[#allocation2 + $0xf8] sm:$0xff] %vm1132, %v2060
        %2223 = vst.msk [vmem:[#allocation2 + $0x100] sm:$0xff] %vm1132, %v2065
        %2224 = vst.msk [vmem:[#allocation2 + $0x108] sm:$0xff] %vm1132, %v2068
        %2225 = vst.msk [vmem:[#allocation2 + $0x110] sm:$0xff] %vm1132, %v2073
        %2226 = vst.msk [vmem:[#allocation2 + $0x118] sm:$0xff] %vm1132, %v2076
        %2227 = vst.msk [vmem:[#allocation2 + $0x120] sm:$0xff] %vm1132, %v2081
        %2228 = vst.msk [vmem:[#allocation2 + $0x128] sm:$0xff] %vm1132, %v2084
        %2229 = vst.msk [vmem:[#allocation2 + $0x130] sm:$0xff] %vm1132, %v2089
        %2230 = vst.msk [vmem:[#allocation2 + $0x138] sm:$0xff] %vm1132, %v2092
        %2231 = vst.msk [vmem:[#allocation2 + $0x140] sm:$0xff] %vm1132, %v2097
        %2232 = vst.msk [vmem:[#allocation2 + $0x148] sm:$0xff] %vm1132, %v2100
        %2233 = vst.msk [vmem:[#allocation2 + $0x150] sm:$0xff] %vm1132, %v2105
        %2234 = vst.msk [vmem:[#allocation2 + $0x158] sm:$0xff] %vm1132, %v2108
        %2235 = vst.msk [vmem:[#allocation2 + $0x160] sm:$0xff] %vm1132, %v2113
        %2236 = vst.msk [vmem:[#allocation2 + $0x168] sm:$0xff] %vm1132, %v2116
        %2237 = vst.msk [vmem:[#allocation2 + $0x170] sm:$0xff] %vm1132, %v2121
        %2238 = vst.msk [vmem:[#allocation2 + $0x178] sm:$0xff] %vm1132, %v2124
        %2239 = vst.msk [vmem:[#allocation2 + $0x180] sm:$0xff] %vm1132, %v2129
        %2240 = vst.msk [vmem:[#allocation2 + $0x188] sm:$0xff] %vm1132, %v2132
        %2241 = vst.msk [vmem:[#allocation2 + $0x190] sm:$0xff] %vm1132, %v2137
        %2242 = vst.msk [vmem:[#allocation2 + $0x198] sm:$0xff] %vm1132, %v2140
        %2243 = vst.msk [vmem:[#allocation2 + $0x1a0] sm:$0xff] %vm1132, %v2145
        %2244 = vst.msk [vmem:[#allocation2 + $0x1a8] sm:$0xff] %vm1132, %v2148
        %2245 = vst.msk [vmem:[#allocation2 + $0x1b0] sm:$0xff] %vm1132, %v2153
        %2246 = vst.msk [vmem:[#allocation2 + $0x1b8] sm:$0xff] %vm1132, %v2156
        %2247 = vst.msk [vmem:[#allocation2 + $0x1c0] sm:$0xff] %vm1132, %v2161
        %2248 = vst.msk [vmem:[#allocation2 + $0x1c8] sm:$0xff] %vm1132, %v2164
        %2249 = vst.msk [vmem:[#allocation2 + $0x1d0] sm:$0xff] %vm1132, %v2169
        %2250 = vst.msk [vmem:[#allocation2 + $0x1d8] sm:$0xff] %vm1132, %v2172
        %2251 = vst.msk [vmem:[#allocation2 + $0x1e0] sm:$0xff] %vm1132, %v2177
        %2252 = vst.msk [vmem:[#allocation2 + $0x1e8] sm:$0xff] %vm1132, %v2180
        %2253 = vst.msk [vmem:[#allocation2 + $0x1f0] sm:$0xff] %vm1132, %v2185
        %2254 = vst.msk [vmem:[#allocation2 + $0x1f8] sm:$0xff] %vm1132, %v2188
        %v2255 = vld [vmem:[#allocation2] ss:$4 sm:$0xff]
        %s2256 = scalar_lea.vmem [#allocation2], 32
        %v2257 = vld [vmem:[%s2256] ss:$4 sm:$0xff]
        %s2258 = scalar_lea.vmem [#allocation2], 64
        %v2259 = vld [vmem:[%s2258] ss:$4 sm:$0xff]
        %s2260 = scalar_lea.vmem [#allocation2], 96
        %v2261 = vld [vmem:[%s2260] ss:$4 sm:$0xff]
        %s2262 = scalar_lea.vmem [#allocation2], 128
        %v2263 = vld [vmem:[%s2262] ss:$4 sm:$0xff]
        %s2264 = scalar_lea.vmem [#allocation2], 160
        %v2265 = vld [vmem:[%s2264] ss:$4 sm:$0xff]
        %s2266 = scalar_lea.vmem [#allocation2], 192
        %v2267 = vld [vmem:[%s2266] ss:$4 sm:$0xff]
        %s2268 = scalar_lea.vmem [#allocation2], 224
        %v2269 = vld [vmem:[%s2268] ss:$4 sm:$0xff]
        %s2270 = scalar_lea.vmem [#allocation2], 256
        %v2271 = vld [vmem:[%s2270] ss:$4 sm:$0xff]
        %s2272 = scalar_lea.vmem [#allocation2], 288
        %v2273 = vld [vmem:[%s2272] ss:$4 sm:$0xff]
        %s2274 = scalar_lea.vmem [#allocation2], 320
        %v2275 = vld [vmem:[%s2274] ss:$4 sm:$0xff]
        %s2276 = scalar_lea.vmem [#allocation2], 352
        %v2277 = vld [vmem:[%s2276] ss:$4 sm:$0xff]
        %s2278 = scalar_lea.vmem [#allocation2], 384
        %v2279 = vld [vmem:[%s2278] ss:$4 sm:$0xff]
        %s2280 = scalar_lea.vmem [#allocation2], 416
        %v2281 = vld [vmem:[%s2280] ss:$4 sm:$0xff]
        %s2282 = scalar_lea.vmem [#allocation2], 448
        %v2283 = vld [vmem:[%s2282] ss:$4 sm:$0xff]
        %s2284 = scalar_lea.vmem [#allocation2], 480
        %v2285 = vld [vmem:[%s2284] ss:$4 sm:$0xff]
        %s2286 = scalar_lea.vmem [#allocation2], 1
        %v2287 = vld [vmem:[%s2286] ss:$4 sm:$0xff]
        %s2288 = scalar_lea.vmem [#allocation2], 33
        %v2289 = vld [vmem:[%s2288] ss:$4 sm:$0xff]
        %s2290 = scalar_lea.vmem [#allocation2], 65
        %v2291 = vld [vmem:[%s2290] ss:$4 sm:$0xff]
        %s2292 = scalar_lea.vmem [#allocation2], 97
        %v2293 = vld [vmem:[%s2292] ss:$4 sm:$0xff]
        %s2294 = scalar_lea.vmem [#allocation2], 129
        %v2295 = vld [vmem:[%s2294] ss:$4 sm:$0xff]
        %s2296 = scalar_lea.vmem [#allocation2], 161
        %v2297 = vld [vmem:[%s2296] ss:$4 sm:$0xff]
        %s2298 = scalar_lea.vmem [#allocation2], 193
        %v2299 = vld [vmem:[%s2298] ss:$4 sm:$0xff]
        %s2300 = scalar_lea.vmem [#allocation2], 225
        %v2301 = vld [vmem:[%s2300] ss:$4 sm:$0xff]
        %s2302 = scalar_lea.vmem [#allocation2], 257
        %v2303 = vld [vmem:[%s2302] ss:$4 sm:$0xff]
        %s2304 = scalar_lea.vmem [#allocation2], 289
        %v2305 = vld [vmem:[%s2304] ss:$4 sm:$0xff]
        %s2306 = scalar_lea.vmem [#allocation2], 321
        %v2307 = vld [vmem:[%s2306] ss:$4 sm:$0xff]
        %s2308 = scalar_lea.vmem [#allocation2], 353
        %v2309 = vld [vmem:[%s2308] ss:$4 sm:$0xff]
        %s2310 = scalar_lea.vmem [#allocation2], 385
        %v2311 = vld [vmem:[%s2310] ss:$4 sm:$0xff]
        %s2312 = scalar_lea.vmem [#allocation2], 417
        %v2313 = vld [vmem:[%s2312] ss:$4 sm:$0xff]
        %s2314 = scalar_lea.vmem [#allocation2], 449
        %v2315 = vld [vmem:[%s2314] ss:$4 sm:$0xff]
        %s2316 = scalar_lea.vmem [#allocation2], 481
        %v2317 = vld [vmem:[%s2316] ss:$4 sm:$0xff]
        %v2318 = vmax.f32 %v2255, %v2287
        %v2319 = vmax.f32 %v2257, %v2289
        %v2320 = vmax.f32 %v2259, %v2291
        %v2321 = vmax.f32 %v2261, %v2293
        %v2322 = vmax.f32 %v2263, %v2295
        %v2323 = vmax.f32 %v2265, %v2297
        %v2324 = vmax.f32 %v2267, %v2299
        %v2325 = vmax.f32 %v2269, %v2301
        %v2326 = vmax.f32 %v2271, %v2303
        %v2327 = vmax.f32 %v2273, %v2305
        %v2328 = vmax.f32 %v2275, %v2307
        %v2329 = vmax.f32 %v2277, %v2309
        %v2330 = vmax.f32 %v2279, %v2311
        %v2331 = vmax.f32 %v2281, %v2313
        %v2332 = vmax.f32 %v2283, %v2315
        %v2333 = vmax.f32 %v2285, %v2317
        %s2334 = scalar_lea.vmem [#allocation2], 2
        %v2335 = vld [vmem:[%s2334] ss:$4 sm:$0xff]
        %s2336 = scalar_lea.vmem [#allocation2], 34
        %v2337 = vld [vmem:[%s2336] ss:$4 sm:$0xff]
        %s2338 = scalar_lea.vmem [#allocation2], 66
        %v2339 = vld [vmem:[%s2338] ss:$4 sm:$0xff]
        %s2340 = scalar_lea.vmem [#allocation2], 98
        %v2341 = vld [vmem:[%s2340] ss:$4 sm:$0xff]
        %s2342 = scalar_lea.vmem [#allocation2], 130
        %v2343 = vld [vmem:[%s2342] ss:$4 sm:$0xff]
        %s2344 = scalar_lea.vmem [#allocation2], 162
        %v2345 = vld [vmem:[%s2344] ss:$4 sm:$0xff]
        %s2346 = scalar_lea.vmem [#allocation2], 194
        %v2347 = vld [vmem:[%s2346] ss:$4 sm:$0xff]
        %s2348 = scalar_lea.vmem [#allocation2], 226
        %v2349 = vld [vmem:[%s2348] ss:$4 sm:$0xff]
        %s2350 = scalar_lea.vmem [#allocation2], 258
        %v2351 = vld [vmem:[%s2350] ss:$4 sm:$0xff]
        %s2352 = scalar_lea.vmem [#allocation2], 290
        %v2353 = vld [vmem:[%s2352] ss:$4 sm:$0xff]
        %s2354 = scalar_lea.vmem [#allocation2], 322
        %v2355 = vld [vmem:[%s2354] ss:$4 sm:$0xff]
        %s2356 = scalar_lea.vmem [#allocation2], 354
        %v2357 = vld [vmem:[%s2356] ss:$4 sm:$0xff]
        %s2358 = scalar_lea.vmem [#allocation2], 386
        %v2359 = vld [vmem:[%s2358] ss:$4 sm:$0xff]
        %s2360 = scalar_lea.vmem [#allocation2], 418
        %v2361 = vld [vmem:[%s2360] ss:$4 sm:$0xff]
        %s2362 = scalar_lea.vmem [#allocation2], 450
        %v2363 = vld [vmem:[%s2362] ss:$4 sm:$0xff]
        %s2364 = scalar_lea.vmem [#allocation2], 482
        %v2365 = vld [vmem:[%s2364] ss:$4 sm:$0xff]
        %v2366 = vmax.f32 %v2318, %v2335
        %v2367 = vmax.f32 %v2319, %v2337
        %v2368 = vmax.f32 %v2320, %v2339
        %v2369 = vmax.f32 %v2321, %v2341
        %v2370 = vmax.f32 %v2322, %v2343
        %v2371 = vmax.f32 %v2323, %v2345
        %v2372 = vmax.f32 %v2324, %v2347
        %v2373 = vmax.f32 %v2325, %v2349
        %v2374 = vmax.f32 %v2326, %v2351
        %v2375 = vmax.f32 %v2327, %v2353
        %v2376 = vmax.f32 %v2328, %v2355
        %v2377 = vmax.f32 %v2329, %v2357
        %v2378 = vmax.f32 %v2330, %v2359
        %v2379 = vmax.f32 %v2331, %v2361
        %v2380 = vmax.f32 %v2332, %v2363
        %v2381 = vmax.f32 %v2333, %v2365
        %s2382 = scalar_lea.vmem [#allocation2], 3
        %v2383 = vld [vmem:[%s2382] ss:$4 sm:$0xff]
        %s2384 = scalar_lea.vmem [#allocation2], 35
        %v2385 = vld [vmem:[%s2384] ss:$4 sm:$0xff]
        %s2386 = scalar_lea.vmem [#allocation2], 67
        %v2387 = vld [vmem:[%s2386] ss:$4 sm:$0xff]
        %s2388 = scalar_lea.vmem [#allocation2], 99
        %v2389 = vld [vmem:[%s2388] ss:$4 sm:$0xff]
        %s2390 = scalar_lea.vmem [#allocation2], 131
        %v2391 = vld [vmem:[%s2390] ss:$4 sm:$0xff]
        %s2392 = scalar_lea.vmem [#allocation2], 163
        %v2393 = vld [vmem:[%s2392] ss:$4 sm:$0xff]
        %s2394 = scalar_lea.vmem [#allocation2], 195
        %v2395 = vld [vmem:[%s2394] ss:$4 sm:$0xff]
        %s2396 = scalar_lea.vmem [#allocation2], 227
        %v2397 = vld [vmem:[%s2396] ss:$4 sm:$0xff]
        %s2398 = scalar_lea.vmem [#allocation2], 259
        %v2399 = vld [vmem:[%s2398] ss:$4 sm:$0xff]
        %s2400 = scalar_lea.vmem [#allocation2], 291
        %v2401 = vld [vmem:[%s2400] ss:$4 sm:$0xff]
        %s2402 = scalar_lea.vmem [#allocation2], 323
        %v2403 = vld [vmem:[%s2402] ss:$4 sm:$0xff]
        %s2404 = scalar_lea.vmem [#allocation2], 355
        %v2405 = vld [vmem:[%s2404] ss:$4 sm:$0xff]
        %s2406 = scalar_lea.vmem [#allocation2], 387
        %v2407 = vld [vmem:[%s2406] ss:$4 sm:$0xff]
        %s2408 = scalar_lea.vmem [#allocation2], 419
        %v2409 = vld [vmem:[%s2408] ss:$4 sm:$0xff]
        %s2410 = scalar_lea.vmem [#allocation2], 451
        %v2411 = vld [vmem:[%s2410] ss:$4 sm:$0xff]
        %s2412 = scalar_lea.vmem [#allocation2], 483
        %v2413 = vld [vmem:[%s2412] ss:$4 sm:$0xff]
        %v2414 = vmax.f32 %v2366, %v2383
        %v2415 = vmax.f32 %v2367, %v2385
        %v2416 = vmax.f32 %v2368, %v2387
        %v2417 = vmax.f32 %v2369, %v2389
        %v2418 = vmax.f32 %v2370, %v2391
        %v2419 = vmax.f32 %v2371, %v2393
        %v2420 = vmax.f32 %v2372, %v2395
        %v2421 = vmax.f32 %v2373, %v2397
        %v2422 = vmax.f32 %v2374, %v2399
        %v2423 = vmax.f32 %v2375, %v2401
        %v2424 = vmax.f32 %v2376, %v2403
        %v2425 = vmax.f32 %v2377, %v2405
        %v2426 = vmax.f32 %v2378, %v2407
        %v2427 = vmax.f32 %v2379, %v2409
        %v2428 = vmax.f32 %v2380, %v2411
        %v2429 = vmax.f32 %v2381, %v2413
        %v2430 = vsel %vm1132, %v2414, 0.0
        %v2431 = vsel %vm1132, %v2415, 0.0
        %v2432 = vadd.f32 %v2430, %v2431
        %v2433 = vsel %vm1132, %v2416, 0.0
        %v2434 = vadd.f32 %v2432, %v2433
        %v2435 = vsel %vm1132, %v2417, 0.0
        %v2436 = vadd.f32 %v2434, %v2435
        %v2437 = vsel %vm1132, %v2418, 0.0
        %v2438 = vadd.f32 %v2436, %v2437
        %v2439 = vsel %vm1132, %v2419, 0.0
        %v2440 = vadd.f32 %v2438, %v2439
        %v2441 = vsel %vm1132, %v2420, 0.0
        %v2442 = vadd.f32 %v2440, %v2441
        %v2443 = vsel %vm1132, %v2421, 0.0
        %v2444 = vadd.f32 %v2442, %v2443
        %v2445 = vsel %vm1132, %v2422, 0.0
        %v2446 = vadd.f32 %v2444, %v2445
        %v2447 = vsel %vm1132, %v2423, 0.0
        %v2448 = vadd.f32 %v2446, %v2447
        %v2449 = vsel %vm1132, %v2424, 0.0
        %v2450 = vadd.f32 %v2448, %v2449
        %v2451 = vsel %vm1132, %v2425, 0.0
        %v2452 = vadd.f32 %v2450, %v2451
        %v2453 = vsel %vm1132, %v2426, 0.0
        %v2454 = vadd.f32 %v2452, %v2453
        %v2455 = vsel %vm1132, %v2427, 0.0
        %v2456 = vadd.f32 %v2454, %v2455
        %v2457 = vsel %vm1132, %v2428, 0.0
        %v2458 = vadd.f32 %v2456, %v2457
        %v2459 = vsel %vm1132, %v2429, 0.0
        %v2460 = vadd.f32 %v2458, %v2459
        %v2461 = vrot.slane %v2460, 4
        %v2462 = vadd.f32 %v2460, %v2461
        %v2463 = vrot.slane %v2462, 2
        %v2464 = vadd.f32 %v2462, %v2463
        %v2465 = vrot.slane %v2464, 1
        %v2466 = vadd.f32 %v2464, %v2465
        %vm2467 = vcmask 516096
        %2468 = vst.msk [vmem:[%s235] sm:$0x1] %vm2467, %v2466
        %v2469 = vmul.f32 %v2414, %v2414
        %v2470 = vmul.f32 %v2415, %v2415
        %v2471 = vmul.f32 %v2416, %v2416
        %v2472 = vmul.f32 %v2417, %v2417
        %v2473 = vmul.f32 %v2418, %v2418
        %v2474 = vmul.f32 %v2419, %v2419
        %v2475 = vmul.f32 %v2420, %v2420
        %v2476 = vmul.f32 %v2421, %v2421
        %v2477 = vmul.f32 %v2422, %v2422
        %v2478 = vmul.f32 %v2423, %v2423
        %v2479 = vmul.f32 %v2424, %v2424
        %v2480 = vmul.f32 %v2425, %v2425
        %v2481 = vmul.f32 %v2426, %v2426
        %v2482 = vmul.f32 %v2427, %v2427
        %v2483 = vmul.f32 %v2428, %v2428
        %v2484 = vmul.f32 %v2429, %v2429
        %v2485 = vsel %vm1132, %v2469, 0.0
        %v2486 = vsel %vm1132, %v2470, 0.0
        %v2487 = vadd.f32 %v2485, %v2486
        %v2488 = vsel %vm1132, %v2471, 0.0
        %v2489 = vadd.f32 %v2487, %v2488
        %v2490 = vsel %vm1132, %v2472, 0.0
        %v2491 = vadd.f32 %v2489, %v2490
        %v2492 = vsel %vm1132, %v2473, 0.0
        %v2493 = vadd.f32 %v2491, %v2492
        %v2494 = vsel %vm1132, %v2474, 0.0
        %v2495 = vadd.f32 %v2493, %v2494
        %v2496 = vsel %vm1132, %v2475, 0.0
        %v2497 = vadd.f32 %v2495, %v2496
        %v2498 = vsel %vm1132, %v2476, 0.0
        %v2499 = vadd.f32 %v2497, %v2498
        %v2500 = vsel %vm1132, %v2477, 0.0
        %v2501 = vadd.f32 %v2499, %v2500
        %v2502 = vsel %vm1132, %v2478, 0.0
        %v2503 = vadd.f32 %v2501, %v2502
        %v2504 = vsel %vm1132, %v2479, 0.0
        %v2505 = vadd.f32 %v2503, %v2504
        %v2506 = vsel %vm1132, %v2480, 0.0
        %v2507 = vadd.f32 %v2505, %v2506
        %v2508 = vsel %vm1132, %v2481, 0.0
        %v2509 = vadd.f32 %v2507, %v2508
        %v2510 = vsel %vm1132, %v2482, 0.0
        %v2511 = vadd.f32 %v2509, %v2510
        %v2512 = vsel %vm1132, %v2483, 0.0
        %v2513 = vadd.f32 %v2511, %v2512
        %v2514 = vsel %vm1132, %v2484, 0.0
        %v2515 = vadd.f32 %v2513, %v2514
        %v2516 = vrot.slane %v2515, 4
        %v2517 = vadd.f32 %v2515, %v2516
        %v2518 = vrot.slane %v2517, 2
        %v2519 = vadd.f32 %v2517, %v2518
        %v2520 = vrot.slane %v2519, 1
        %v2521 = vadd.f32 %v2519, %v2520
        %2522 = vst.msk [vmem:[%s242] sm:$0x1] %vm2467, %v2521
        %2523 = vxpose.xlu0.b32.start [1/16] %v2414, 128
        %2524 = vxpose.xlu0.b32.cont [2/16] %v2415, 128
        %2525 = vxpose.xlu0.b32.cont [3/16] %v2416, 128
        %2526 = vxpose.xlu0.b32.cont [4/16] %v2417, 128
        %2527 = vxpose.xlu0.b32.cont [5/16] %v2418, 128
        %2528 = vxpose.xlu0.b32.cont [6/16] %v2419, 128
        %2529 = vxpose.xlu0.b32.cont [7/16] %v2420, 128
        %2530 = vxpose.xlu0.b32.cont [8/16] %v2421, 128
        %2531 = vxpose.xlu0.b32.cont [9/16] %v2422, 128
        %2532 = vxpose.xlu0.b32.cont [10/16] %v2423, 128
        %2533 = vxpose.xlu0.b32.cont [11/16] %v2424, 128
        %2534 = vxpose.xlu0.b32.cont [12/16] %v2425, 128
        %2535 = vxpose.xlu0.b32.cont [13/16] %v2426, 128
        %2536 = vxpose.xlu0.b32.cont [14/16] %v2427, 128
        %2537 = vxpose.xlu0.b32.cont [15/16] %v2428, 128
        %2538 = vxpose.xlu0.b32.end [16/16] %v2429, 128
        %v2539 = vpop.trf.xlu0
        %v2540 = vpop.trf.xlu0
        %v2541 = vpop.trf.xlu0
        %v2542 = vpop.trf.xlu0
        %v2543 = vpop.trf.xlu0
        %v2544 = vpop.trf.xlu0
        %v2545 = vpop.trf.xlu0
        %v2546 = vpop.trf.xlu0
        %v2547 = vpop.trf.xlu0
        %v2548 = vpop.trf.xlu0
        %v2549 = vpop.trf.xlu0
        %v2550 = vpop.trf.xlu0
        %v2551 = vpop.trf.xlu0
        %v2552 = vpop.trf.xlu0
        %v2553 = vpop.trf.xlu0
        %v2554 = vpop.trf.xlu0
        %v2555 = vpack.c.bf16 %v2540, %v2539
        %v2556 = vpack.c.bf16 %v2542, %v2541
        %v2557 = vpack.c.bf16 %v2544, %v2543
        %v2558 = vpack.c.bf16 %v2546, %v2545
        %v2563 = vunpack.c.l.b16 %v2555
        %v2564 = vunpack.c.h.b16 %v2555
        %v2565 = vunpack.c.l.b16 %v2556
        %v2566 = vunpack.c.h.b16 %v2556
        %v2567 = vunpack.c.l.b16 %v2557
        %v2568 = vunpack.c.h.b16 %v2557
        %v2569 = vunpack.c.l.b16 %v2558
        %v2570 = vunpack.c.h.b16 %v2558
        %v2571 = vpack.c.b16 %v2563, %v2563
        %v2572 = vpack.c.b16 %v2564, %v2564
        %v2573 = vpack.c.b16 %v2565, %v2565
        %v2574 = vpack.c.b16 %v2566, %v2566
        %v2575 = vpack.c.b16 %v2567, %v2567
        %v2576 = vpack.c.b16 %v2568, %v2568
        %v2577 = vpack.c.b16 %v2569, %v2569
        %v2578 = vpack.c.b16 %v2570, %v2570
        %2587 = vst [vmem:[%s205] sm:$0xf] %v2571
        %2588 = vst [vmem:[%s205 + $0x4] sm:$0xf] %v2572
        %2589 = vst [vmem:[%s205 + $0x8] sm:$0xf] %v2573
        %2590 = vst [vmem:[%s205 + $0xc] sm:$0xf] %v2574
        %2591 = vst [vmem:[%s205 + $0x10] sm:$0xf] %v2575
        %2592 = vst [vmem:[%s205 + $0x14] sm:$0xf] %v2576
        %2593 = vst [vmem:[%s205 + $0x18] sm:$0xf] %v2577
        %2594 = vst [vmem:[%s205 + $0x1c] sm:$0xf] %v2578
        %s2595 = sand.u32 %s85, 1
        %s2596 = sand.u32 %s85, 1
        %s2597 = smul.addr %s2596, 32
        %s2598 = scalar_lea.vmem [#allocation3], %s2597
        %p2599 = scmp.lt.s32.totalorder %s20, 3
        %s2600 = scalar_select %p2599, %s20, 3
        %p2601 = scmp.lt.s32.totalorder %s21, 3
        %s2602 = scalar_select %p2601, %s21, 3
        %s2603 = smul.addr %s2600, 4
        %s2604 = sadd.s32 %s2602, %s2603
        %s2605 = scalar_lea.vmem %s3, %s2604
        %p2606 = scmp.lt.s32.totalorder %s20, 3
        %s2607 = scalar_select %p2606, %s20, 3
        %p2608 = scmp.lt.s32.totalorder %s21, 3
        %s2609 = scalar_select %p2608, %s21, 3
        %s2610 = smul.addr %s2607, 4
        %s2611 = sadd.s32 %s2609, %s2610
        %s2612 = scalar_lea.vmem %s4, %s2611
        // Predicated region
        $region29: #{dcgan_conv1d_forward.2} parent=27 // pred_check
          %p2613 = pneg %p95
        $region30: #{dcgan_conv1d_forward.2} parent=27 // pred_check_branch
          %2615 = sbr.rel (%p2613) target = $region32
        $region31: #{dcgan_conv1d_forward.2} parent=27 // pred_region
          %s2616 = smul.addr %s20, 32
          %s2617 = sadd.s32 %s21, %s2616
          %s2618 = smul.addr %s2617, 4
          %s2619 = scalar_lea.vmem %s2, %s2618
          // Predicated region
          $region33: #{dcgan_conv1d_forward.2} parent=31 // pred_check
            _
          $region34: #{dcgan_conv1d_forward.2} parent=31 // pred_check_branch
            %2621 = sbr.rel (0) target = $region36
          $region35: #{dcgan_conv1d_forward.2} parent=31 // pred_region
            // Predicated region
            $region37: #{dcgan_conv1d_forward.2} parent=35 // pred_check
              _
            $region38: #{dcgan_conv1d_forward.2} parent=35 // pred_check_branch
              %2623 = sbr.rel target = $region40
            $region39: #{dcgan_conv1d_forward.2} parent=35 // pred_region
              // Predicated region
              $region52: #{dcgan_conv1d_forward.2} parent=39 // pred_check
                _
              $region53: #{dcgan_conv1d_forward.2} parent=39 // pred_check_branch
                %2653 = sbr.rel (0) target = $region55
              $region54: #{dcgan_conv1d_forward.2} parent=39 // pred_region
                loop: start=0, step=1, limit=1
                $region56: #{dcgan_conv1d_forward.2} parent=54 // loop_pre_header
                  _
                $region57: #{dcgan_conv1d_forward.2} parent=54 // loop_header
                  %s2655 = sphi 0, %s2659
                  %p2656 = scmp.ge.s32.totalorder %s2655, 1
                  %s2660 = sphi %s2598, %s2598
                  %s2661 = sphi %s2619, %s2619
                $region58: #{dcgan_conv1d_forward.2} parent=54 // loop_header_branch
                  %2658 = sbr.rel (%p2656) target = $region62
                $region59: #{dcgan_conv1d_forward.2} parent=54 // loop_body
                  _
                $region60: #{dcgan_conv1d_forward.2} parent=54 // loop_footer
                  %s2659 = sadd.s32 1, %s2655
                $region61: #{dcgan_conv1d_forward.2} parent=54 // loop_footer_branch
                  %2654 = sbr.rel target = $region57
                $region62: #{dcgan_conv1d_forward.2} parent=54 // loop_exit
                  _
                %s2663 = ssub.s32 16, 1
                loop: start=0, step=1, limit=1
                $region63: #{dcgan_conv1d_forward.2} parent=54 // loop_pre_header
                  _
                $region64: #{dcgan_conv1d_forward.2} parent=54 // loop_header
                  %s2665 = sphi 0, %s2669
                  %p2666 = scmp.ge.s32.totalorder %s2665, 1
                  %s2670 = sphi %s2598, %s2598
                  %s2671 = sphi %s2619, %s2619
                $region65: #{dcgan_conv1d_forward.2} parent=54 // loop_header_branch
                  %2668 = sbr.rel (%p2666) target = $region69
                $region66: #{dcgan_conv1d_forward.2} parent=54 // loop_body
                  %v2672 = vld [vmem:[%s2670] sm:%s2663]
                  %2673 = vst [vmem:[%s2671] sm:%s2663] %v2672
                  %v2674 = vld [vmem:[%s2670 + $0x4] sm:%s2663]
                  %2675 = vst [vmem:[%s2671 + $0x10] sm:%s2663] %v2674
                  %v2676 = vld [vmem:[%s2670 + $0x8] sm:%s2663]
                  %2677 = vst [vmem:[%s2671 + $0x20] sm:%s2663] %v2676
                  %v2678 = vld [vmem:[%s2670 + $0xc] sm:%s2663]
                  %2679 = vst [vmem:[%s2671 + $0x30] sm:%s2663] %v2678
                  %v2680 = vld [vmem:[%s2670 + $0x10] sm:%s2663]
                  %2681 = vst [vmem:[%s2671 + $0x40] sm:%s2663] %v2680
                  %v2682 = vld [vmem:[%s2670 + $0x14] sm:%s2663]
                  %2683 = vst [vmem:[%s2671 + $0x50] sm:%s2663] %v2682
                  %v2684 = vld [vmem:[%s2670 + $0x18] sm:%s2663]
                  %2685 = vst [vmem:[%s2671 + $0x60] sm:%s2663] %v2684
                  %v2686 = vld [vmem:[%s2670 + $0x1c] sm:%s2663]
                  %2687 = vst [vmem:[%s2671 + $0x70] sm:%s2663] %v2686
                $region67: #{dcgan_conv1d_forward.2} parent=54 // loop_footer
                  %s2669 = sadd.s32 1, %s2665
                $region68: #{dcgan_conv1d_forward.2} parent=54 // loop_footer_branch
                  %2664 = sbr.rel target = $region64
                $region69: #{dcgan_conv1d_forward.2} parent=54 // loop_exit
                  _
              $region55: #{dcgan_conv1d_forward.2} parent=39 // pred_fallthru
                _
            $region40: #{dcgan_conv1d_forward.2} parent=35 // pred_fallthru
              _
            // Predicated region
            $region41: #{dcgan_conv1d_forward.2} parent=35 // pred_check
              _
            $region42: #{dcgan_conv1d_forward.2} parent=35 // pred_check_branch
              %2625 = sbr.rel (0) target = $region44
            $region43: #{dcgan_conv1d_forward.2} parent=35 // pred_region
              %s2627 = ssub.s32 16, 1
              loop: start=0, step=1, limit=1
              $region45: #{dcgan_conv1d_forward.2} parent=43 // loop_pre_header
                _
              $region46: #{dcgan_conv1d_forward.2} parent=43 // loop_header
                %s2629 = sphi 0, %s2633
                %p2630 = scmp.ge.s32.totalorder %s2629, 1
                %s2634 = sphi %s2598, %s2598
                %s2635 = sphi %s2619, %s2619
              $region47: #{dcgan_conv1d_forward.2} parent=43 // loop_header_branch
                %2632 = sbr.rel (%p2630) target = $region51
              $region48: #{dcgan_conv1d_forward.2} parent=43 // loop_body
                %v2636 = vld [vmem:[%s2634] sm:%s2627]
                %2637 = vst [vmem:[%s2635] sm:%s2627] %v2636
                %v2638 = vld [vmem:[%s2634 + $0x4] sm:%s2627]
                %2639 = vst [vmem:[%s2635 + $0x10] sm:%s2627] %v2638
                %v2640 = vld [vmem:[%s2634 + $0x8] sm:%s2627]
                %2641 = vst [vmem:[%s2635 + $0x20] sm:%s2627] %v2640
                %v2642 = vld [vmem:[%s2634 + $0xc] sm:%s2627]
                %2643 = vst [vmem:[%s2635 + $0x30] sm:%s2627] %v2642
                %v2644 = vld [vmem:[%s2634 + $0x10] sm:%s2627]
                %2645 = vst [vmem:[%s2635 + $0x40] sm:%s2627] %v2644
                %v2646 = vld [vmem:[%s2634 + $0x14] sm:%s2627]
                %2647 = vst [vmem:[%s2635 + $0x50] sm:%s2627] %v2646
                %v2648 = vld [vmem:[%s2634 + $0x18] sm:%s2627]
                %2649 = vst [vmem:[%s2635 + $0x60] sm:%s2627] %v2648
                %v2650 = vld [vmem:[%s2634 + $0x1c] sm:%s2627]
                %2651 = vst [vmem:[%s2635 + $0x70] sm:%s2627] %v2650
              $region49: #{dcgan_conv1d_forward.2} parent=43 // loop_footer
                %s2633 = sadd.s32 1, %s2629
              $region50: #{dcgan_conv1d_forward.2} parent=43 // loop_footer_branch
                %2628 = sbr.rel target = $region46
              $region51: #{dcgan_conv1d_forward.2} parent=43 // loop_exit
                _
            $region44: #{dcgan_conv1d_forward.2} parent=35 // pred_fallthru
              _
          $region36: #{dcgan_conv1d_forward.2} parent=31 // pred_fallthru
            _
          %2688 = vnop
        $region32: #{dcgan_conv1d_forward.2} parent=27 // pred_fallthru
          _
        // Predicated region
        $region70: #{dcgan_conv1d_forward.2} parent=27 // pred_check
          %p2689 = pneg %p123
        $region71: #{dcgan_conv1d_forward.2} parent=27 // pred_check_branch
          %2691 = sbr.rel (%p2689) target = $region73
        $region72: #{dcgan_conv1d_forward.2} parent=27 // pred_region
          _
        $region73: #{dcgan_conv1d_forward.2} parent=27 // pred_fallthru
          _
        // Predicated region
        $region74: #{dcgan_conv1d_forward.2} parent=27 // pred_check
          %p2692 = pneg %p151
        $region75: #{dcgan_conv1d_forward.2} parent=27 // pred_check_branch
          %2694 = sbr.rel (%p2692) target = $region77
        $region76: #{dcgan_conv1d_forward.2} parent=27 // pred_region
          _
        $region77: #{dcgan_conv1d_forward.2} parent=27 // pred_fallthru
          _
      $region28: #{dcgan_conv1d_forward.2} parent=5 // pred_fallthru
        _
      %p2695 = scmp.le.s32.totalorder 2, %s11
      // Predicated region
      $region78: #{dcgan_conv1d_forward.2} parent=5 // pred_check
        %p2696 = pneg %p2695
      $region79: #{dcgan_conv1d_forward.2} parent=5 // pred_check_branch
        %2698 = sbr.rel (%p2696) target = $region81
      $region80: #{dcgan_conv1d_forward.2} parent=5 // pred_region
        %s2699 = ssub.s32 %s11, 2
        // Predicated region
        $region82: #{dcgan_conv1d_forward.2} parent=80 // pred_check
          %p2700 = pneg %p101
        $region83: #{dcgan_conv1d_forward.2} parent=80 // pred_check_branch
          %2702 = sbr.rel (%p2700) target = $region85
        $region84: #{dcgan_conv1d_forward.2} parent=80 // pred_region
          %s2703 = sand.u32 %s86, 1
          %s2704 = sand.u32 %s86, 1
          %s2705 = smul.addr %s2704, 32
          %s2706 = scalar_lea.vmem [#allocation3], %s2705
        $region85: #{dcgan_conv1d_forward.2} parent=80 // pred_fallthru
          _
        // Predicated region
        $region86: #{dcgan_conv1d_forward.2} parent=80 // pred_check
          %p2707 = pneg %p129
        $region87: #{dcgan_conv1d_forward.2} parent=80 // pred_check_branch
          %2709 = sbr.rel (%p2707) target = $region89
        $region88: #{dcgan_conv1d_forward.2} parent=80 // pred_region
          %p2710 = scmp.lt.s32.totalorder %s22, 3
          %s2711 = scalar_select %p2710, %s22, 3
          %p2712 = scmp.lt.s32.totalorder %s23, 3
          %s2713 = scalar_select %p2712, %s23, 3
          %s2714 = smul.addr %s2711, 4
          %s2715 = sadd.s32 %s2713, %s2714
          %s2716 = scalar_lea.vmem %s3, %s2715
        $region89: #{dcgan_conv1d_forward.2} parent=80 // pred_fallthru
          _
        // Predicated region
        $region90: #{dcgan_conv1d_forward.2} parent=80 // pred_check
          %p2717 = pneg %p157
        $region91: #{dcgan_conv1d_forward.2} parent=80 // pred_check_branch
          %2719 = sbr.rel (%p2717) target = $region93
        $region92: #{dcgan_conv1d_forward.2} parent=80 // pred_region
          %p2720 = scmp.lt.s32.totalorder %s22, 3
          %s2721 = scalar_select %p2720, %s22, 3
          %p2722 = scmp.lt.s32.totalorder %s23, 3
          %s2723 = scalar_select %p2722, %s23, 3
          %s2724 = smul.addr %s2721, 4
          %s2725 = sadd.s32 %s2723, %s2724
          %s2726 = scalar_lea.vmem %s4, %s2725
        $region93: #{dcgan_conv1d_forward.2} parent=80 // pred_fallthru
          _
      $region81: #{dcgan_conv1d_forward.2} parent=5 // pred_fallthru
        _
    $region6: #{dcgan_conv1d_forward.2} parent=1 // loop_footer
      %s15 = sadd.s32 1, %s11
    $region7: #{dcgan_conv1d_forward.2} parent=1 // loop_footer_branch
      %10 = sbr.rel target = $region3
    $region8: #{dcgan_conv1d_forward.2} parent=1 // loop_exit
      _

</llo_original>
